<compile_context>
chip_gen: v5e
topology: v5e:2x2
jax: 0.10.0
libtpu: 0.0.40
codegen_flags: <defaults>
</compile_context>

<pallas_src>
import functools

import jax
import jax.numpy as jnp
from jax.experimental import pallas as pl
from jax.experimental.pallas import tpu as pltpu


# ---------------------------------------------------------------------------
# Token shifting (pure integer elementwise glue, matches shift_tokens exactly)
# ---------------------------------------------------------------------------
def shift_tokens(inp):
    inp = inp.astype(jnp.int32)
    t0, t1, t2, t3 = inp[:, :, 0], inp[:, :, 1], inp[:, :, 2], inp[:, :, 3]

    metaidx = (t0 >= 560) & (t0 <= 729)
    posidx = (t0 >= 432) & (t0 <= 559)
    t0 = t0 - 557 * metaidx.astype(jnp.int32) - 260 * posidx.astype(jnp.int32)

    chordidx = (t1 >= 195) & (t1 <= 303)
    velidx = (t1 >= 131) & (t1 <= 194)
    t1 = t1 - 194 * chordidx.astype(jnp.int32) - 21 * velidx.astype(jnp.int32)

    pitchidx = (t2 >= 3) & (t2 <= 130)
    t2 = t2 - 2 * pitchidx.astype(jnp.int32)

    duridx = (t3 >= 304) & (t3 <= 431)
    t3 = t3 - 303 * duridx.astype(jnp.int32)

    return jnp.stack([t0, t1, t2, t3], axis=-1)


def _round_up(x, m):
    return (x + m - 1) // m * m


# ---------------------------------------------------------------------------
# Pallas kernel: fused masked group projection (lane-dense, k-packed layout)
# ---------------------------------------------------------------------------
def group_embed_kernel(e_ref, m_ref, w_ref, b_ref, o_ref, *, d_embed, d_proj, k):
    d4 = 4 * d_embed
    P = d_proj

    e = e_ref[...]            # [tm_r, k*4D]  bf16 : k packed rows of (embed0|1|2|3)
    m = m_ref[...]            # [tm_r, 3*k]   f32  : (mask1,mask2,mask4) per packed row
    w = w_ref[...]            # [4D, 3P]      bf16 : [W1_pad | W2_pad | W4] * emb_scale
    b = b_ref[...]            # [3, P]        f32  : [b1; b2; b4] * emb_scale

    pieces = []
    for j in range(k):        # k is small and static -> unrolled
        ej = e[:, j * d4:(j + 1) * d4]                               # [tm_r, 4D]
        l = jnp.dot(ej, w, preferred_element_type=jnp.float32)       # [tm_r, 3P] f32 acc
        mj = m[:, 3 * j:3 * (j + 1)]                                 # [tm_r, 3]
        oj = ((l[:, 0:P] + b[0:1, :]) * mj[:, 0:1]
              + (l[:, P:2 * P] + b[1:2, :]) * mj[:, 1:2]
              + (l[:, 2 * P:3 * P] + b[2:3, :]) * mj[:, 2:3])
        pieces.append(oj)

    out = pieces[0] if k == 1 else jnp.concatenate(pieces, axis=-1)  # [tm_r, k*P]
    o_ref[...] = out.astype(o_ref.dtype)


def group_embedding_projection(e, masks, w_all, b_stack, d_embed, d_proj, tm=512):
    """e: [N, 4D] bf16, masks: [N, 3] f32, w_all: [4D, 3P] bf16, b_stack: [3, P] f32."""
    N = e.shape[0]
    P = d_proj

    # Lane-dense packing factor for the output (skip if already >= 128 lanes).
    k = (128 // P) if (P < 128 and 128 % P == 0) else 1

    # tm = true rows per grid step; packed rows per step (tm // k) must be a
    # multiple of 16 (bf16 sublane tile of the e input).
    tm = _round_up(max(tm, 16 * k), 16 * k)
    N_pad = _round_up(N, tm)
    if N_pad != N:
        e = jnp.pad(e, ((0, N_pad - N), (0, 0)))
        masks = jnp.pad(masks, ((0, N_pad - N), (0, 0)))
    tm_r = tm // k

    # Free row-major reshapes into the k-packed layout.
    e_p = e.reshape(N_pad // k, k * 4 * d_embed)
    m_p = masks.reshape(N_pad // k, 3 * k)

    kernel = functools.partial(group_embed_kernel, d_embed=d_embed, d_proj=P, k=k)
    out_p = pl.pallas_call(
        kernel,
        out_shape=jax.ShapeDtypeStruct((N_pad // k, k * P), jnp.float32),
        grid_spec=pltpu.PrefetchScalarGridSpec(
            num_scalar_prefetch=0,
            grid=(N_pad // tm,),
            in_specs=[
                pl.BlockSpec((tm_r, k * 4 * d_embed), lambda i: (i, 0)),
                pl.BlockSpec((tm_r, 3 * k), lambda i: (i, 0)),
                pl.BlockSpec((4 * d_embed, 3 * P), lambda i: (0, 0)),
                pl.BlockSpec((3, P), lambda i: (0, 0)),
            ],
            out_specs=pl.BlockSpec((tm_r, k * P), lambda i: (i, 0)),
        ),
        compiler_params=pltpu.CompilerParams(
            dimension_semantics=("parallel",),
        ),
    )(e_p, m_p, w_all, b_stack)

    return out_p.reshape(N_pad, P)[:N]


# ---------------------------------------------------------------------------
# Parameter construction & fused-weight prep (plain-JAX glue, one-time)
# ---------------------------------------------------------------------------
def init_group_embedding_params(key, n_tokens, d_embed, d_proj):
    ks = jax.random.split(key, 4 + 6)
    params = {}
    # nn.Embedding default: normal(0, 1)
    params["embed"] = [
        jax.random.normal(ks[i], (n, d_embed), dtype=jnp.float32)
        for i, n in enumerate(n_tokens)
    ]
    # nn.Linear: uniform(-1/sqrt(fan_in), 1/sqrt(fan_in)); stored as [in, out]
    def linear(kw, kb, fan_in, fan_out):
        lim = 1.0 / (fan_in ** 0.5)
        w = jax.random.uniform(kw, (fan_in, fan_out), jnp.float32, -lim, lim)
        b_ = jax.random.uniform(kb, (fan_out,), jnp.float32, -lim, lim)
        return w, b_
    params["w1"], params["b1"] = linear(ks[4], ks[5], d_embed, d_proj)
    params["w2"], params["b2"] = linear(ks[6], ks[7], 2 * d_embed, d_proj)
    params["w4"], params["b4"] = linear(ks[8], ks[9], 4 * d_embed, d_proj)
    return params


def prepare_fused_weights(params, d_embed, d_proj, compute_dtype=jnp.bfloat16):
    """Zero-pad W1/W2 along K, concat with W4 along N, fold emb_scale into W and b."""
    D = d_embed
    scale = float(d_proj) ** 0.5
    w1p = jnp.pad(params["w1"], ((0, 3 * D), (0, 0)))   # [4D, P]
    w2p = jnp.pad(params["w2"], ((0, 2 * D), (0, 0)))   # [4D, P]
    w4 = params["w4"]                                   # [4D, P]
    w_all = (jnp.concatenate([w1p, w2p, w4], axis=1) * scale).astype(compute_dtype)
    b_stack = (jnp.stack([params["b1"], params["b2"], params["b4"]], axis=0)
               * scale).astype(jnp.float32)             # [3, P]
    return w_all, b_stack


def group_embedding_forward(params, inp, d_embed, d_proj,
                            compute_dtype=jnp.bfloat16, tm=512):
    B, S, _ = inp.shape
    t = shift_tokens(inp)                                               # [B, S, 4]

    # Embedding gathers (data-dependent, cheap) in plain JAX; bf16 slab for the kernel.
    # TODO(synk): fuse gather+concat into the pallas_call input to kill the HBM round-trip.
    emb = [params["embed"][i][t[:, :, i]].astype(compute_dtype) for i in range(4)]
    e = jnp.concatenate(emb, axis=-1).reshape(B * S, 4 * d_embed)       # [N, 4D] bf16

    t1 = t[:, :, 1].reshape(-1)
    t2 = t[:, :, 2].reshape(-1)
    mask1 = t1 == 0
    mask2 = (t2 == 0) & ~mask1
    mask4 = ~(mask1 | mask2)
    masks = jnp.stack([mask1, mask2, mask4], axis=-1).astype(jnp.float32)  # [N, 3]

    w_all, b_stack = prepare_fused_weights(params, d_embed, d_proj, compute_dtype)

    out = group_embedding_projection(e, masks, w_all, b_stack, d_embed, d_proj, tm=tm)
    return out.reshape(B, S, d_proj)


def group_embedding_reference(params, inp, d_embed, d_proj):
    """Pure-JAX f32 reference mirroring the PyTorch forward."""
    t = shift_tokens(inp)
    e0 = params["embed"][0][t[:, :, 0]]
    e1 = params["embed"][1][t[:, :, 1]]
    e2 = params["embed"][2][t[:, :, 2]]
    e3 = params["embed"][3][t[:, :, 3]]
    e01 = jnp.concatenate([e0, e1], axis=-1)
    e0123 = jnp.concatenate([e0, e1, e2, e3], axis=-1)
    mask1 = t[:, :, 1] == 0
    mask2 = (t[:, :, 2] == 0) & ~mask1
    mask4 = ~(mask1 | mask2)
    l1 = (e0 @ params["w1"] + params["b1"]) * mask1[..., None]
    l2 = (e01 @ params["w2"] + params["b2"]) * mask2[..., None]
    l4 = (e0123 @ params["w4"] + params["b4"]) * mask4[..., None]
    return (l1 + l2 + l4) * (d_proj ** 0.5)


if __name__ == "__main__":
    B, S = 2, 8
    d_embed, d_proj = 32, 32
    # vocab sizes large enough for the shifted token ranges
    n_tokens = [300, 174, 129, 129]

    key = jax.random.PRNGKey(0)
    kp, k0, k1, k2, k3, km = jax.random.split(key, 6)

    params = init_group_embedding_params(kp, n_tokens, d_embed, d_proj)

    # Tokens in the original (pre-shift) vocab ranges, with pads to hit all 3 masks.
    t0 = jax.random.randint(k0, (B, S), 560, 730)   # meta
    t1 = jax.random.randint(k1, (B, S), 195, 304)   # chord
    t2 = jax.random.randint(k2, (B, S), 3, 131)     # pitch
    t3 = jax.random.randint(k3, (B, S), 304, 432)   # duration
    kind = jax.random.randint(km, (B, S), 0, 3)
    t1 = jnp.where(kind == 0, 0, t1)                # -> mask1 rows
    t2 = jnp.where(kind <= 1, 0, t2)                # -> mask2 rows (when t1 != 0)
    t3 = jnp.where(kind <= 1, 0, t3)
    inp = jnp.stack([t0, t1, t2, t3], axis=-1).astype(jnp.int32)   # [2, 8, 4]

    fwd = jax.jit(functools.partial(group_embedding_forward,
                                    d_embed=d_embed, d_proj=d_proj))
    out = jax.block_until_ready(fwd(params, inp))

    ref = group_embedding_reference(params, inp, d_embed, d_proj)
    assert out.shape == (B, S, d_proj)
    # bf16 inputs/weights with f32 accumulation -> loosened tolerance vs the f32 reference.
    assert jnp.allclose(out, ref, atol=2e-1, rtol=2e-2), "mismatch vs reference"

    print("KERNEL_OK")
</pallas_src>

<mosaic_0001>
module attributes {stable_mosaic.version = 11 : i64} {
  func.func @group_embed_kernel(%arg0: i32, %arg1: memref<128x512xbf16, #tpu.memory_space<vmem>>, %arg2: memref<128x12xf32, #tpu.memory_space<vmem>>, %arg3: memref<128x96xbf16, #tpu.memory_space<vmem>>, %arg4: memref<3x32xf32, #tpu.memory_space<vmem>>, %arg5: memref<128x128xf32, #tpu.memory_space<vmem>>) attributes {dimension_semantics = [#tpu.dimension_semantics<parallel>], iteration_bounds = array<i64: 1>, scalar_prefetch = 0 : i64, scratch_operands = 0 : i64, tpu.core_type = #tpu.core_type<tc>, window_params = [{transform_indices = @transform_0, window_bounds = array<i64: 128, 512>}, {transform_indices = @transform_1, window_bounds = array<i64: 128, 12>}, {pipeline_mode = #tpu.pipeline_mode<synchronous>, transform_indices = @transform_2, window_bounds = array<i64: 128, 96>}, {pipeline_mode = #tpu.pipeline_mode<synchronous>, transform_indices = @transform_3, window_bounds = array<i64: 3, 32>}, {transform_indices = @transform_4, window_bounds = array<i64: 128, 128>}]} {
    %c0 = arith.constant 0 : index
    %c0_0 = arith.constant 0 : index
    %0 = vector.load %arg1[%c0, %c0_0] : memref<128x512xbf16, #tpu.memory_space<vmem>>, vector<128x512xbf16>
    %c0_1 = arith.constant 0 : index
    %c0_2 = arith.constant 0 : index
    %1 = vector.load %arg2[%c0_1, %c0_2] : memref<128x12xf32, #tpu.memory_space<vmem>>, vector<128x12xf32>
    %c0_3 = arith.constant 0 : index
    %c0_4 = arith.constant 0 : index
    %2 = vector.load %arg3[%c0_3, %c0_4] : memref<128x96xbf16, #tpu.memory_space<vmem>>, vector<128x96xbf16>
    %c0_5 = arith.constant 0 : index
    %c0_6 = arith.constant 0 : index
    %3 = vector.load %arg4[%c0_5, %c0_6] : memref<3x32xf32, #tpu.memory_space<vmem>>, vector<3x32xf32>
    %4 = vector.extract_strided_slice %0 {offsets = [0, 0], sizes = [128, 128], strides = [1, 1]} : vector<128x512xbf16> to vector<128x128xbf16>
    %cst = arith.constant dense<0.000000e+00> : vector<128x96xf32>
    %5 = tpu.matmul %4, %2, %cst {dimension_numbers = #tpu.dot_dimension_numbers<[1], [0], [0], [1], [0, 0, 1, 1], [], []>} : vector<128x128xbf16>, vector<128x96xbf16>, vector<128x96xf32> -> vector<128x96xf32>
    %6 = vector.extract_strided_slice %1 {offsets = [0, 0], sizes = [128, 3], strides = [1, 1]} : vector<128x12xf32> to vector<128x3xf32>
    %7 = vector.extract_strided_slice %5 {offsets = [0, 0], sizes = [128, 32], strides = [1, 1]} : vector<128x96xf32> to vector<128x32xf32>
    %8 = vector.extract_strided_slice %3 {offsets = [0, 0], sizes = [1, 32], strides = [1, 1]} : vector<3x32xf32> to vector<1x32xf32>
    %9 = vector.broadcast %8 : vector<1x32xf32> to vector<128x32xf32>
    %10 = arith.addf %7, %9 : vector<128x32xf32>
    %11 = vector.extract_strided_slice %6 {offsets = [0, 0], sizes = [128, 1], strides = [1, 1]} : vector<128x3xf32> to vector<128x1xf32>
    %12 = vector.broadcast %11 : vector<128x1xf32> to vector<128x32xf32>
    %13 = arith.mulf %10, %12 : vector<128x32xf32>
    %14 = vector.extract_strided_slice %5 {offsets = [0, 32], sizes = [128, 32], strides = [1, 1]} : vector<128x96xf32> to vector<128x32xf32>
    %15 = vector.extract_strided_slice %3 {offsets = [1, 0], sizes = [1, 32], strides = [1, 1]} : vector<3x32xf32> to vector<1x32xf32>
    %16 = vector.broadcast %15 : vector<1x32xf32> to vector<128x32xf32>
    %17 = arith.addf %14, %16 : vector<128x32xf32>
    %18 = vector.extract_strided_slice %6 {offsets = [0, 1], sizes = [128, 1], strides = [1, 1]} : vector<128x3xf32> to vector<128x1xf32>
    %19 = vector.broadcast %18 : vector<128x1xf32> to vector<128x32xf32>
    %20 = arith.mulf %17, %19 : vector<128x32xf32>
    %21 = arith.addf %13, %20 : vector<128x32xf32>
    %22 = vector.extract_strided_slice %5 {offsets = [0, 64], sizes = [128, 32], strides = [1, 1]} : vector<128x96xf32> to vector<128x32xf32>
    %23 = vector.extract_strided_slice %3 {offsets = [2, 0], sizes = [1, 32], strides = [1, 1]} : vector<3x32xf32> to vector<1x32xf32>
    %24 = vector.broadcast %23 : vector<1x32xf32> to vector<128x32xf32>
    %25 = arith.addf %22, %24 : vector<128x32xf32>
    %26 = vector.extract_strided_slice %6 {offsets = [0, 2], sizes = [128, 1], strides = [1, 1]} : vector<128x3xf32> to vector<128x1xf32>
    %27 = vector.broadcast %26 : vector<128x1xf32> to vector<128x32xf32>
    %28 = arith.mulf %25, %27 : vector<128x32xf32>
    %29 = arith.addf %21, %28 : vector<128x32xf32>
    %30 = vector.extract_strided_slice %0 {offsets = [0, 128], sizes = [128, 128], strides = [1, 1]} : vector<128x512xbf16> to vector<128x128xbf16>
    %cst_7 = arith.constant dense<0.000000e+00> : vector<128x96xf32>
    %31 = tpu.matmul %30, %2, %cst_7 {dimension_numbers = #tpu.dot_dimension_numbers<[1], [0], [0], [1], [0, 0, 1, 1], [], []>} : vector<128x128xbf16>, vector<128x96xbf16>, vector<128x96xf32> -> vector<128x96xf32>
    %32 = vector.extract_strided_slice %1 {offsets = [0, 3], sizes = [128, 3], strides = [1, 1]} : vector<128x12xf32> to vector<128x3xf32>
    %33 = vector.extract_strided_slice %31 {offsets = [0, 0], sizes = [128, 32], strides = [1, 1]} : vector<128x96xf32> to vector<128x32xf32>
    %34 = vector.extract_strided_slice %3 {offsets = [0, 0], sizes = [1, 32], strides = [1, 1]} : vector<3x32xf32> to vector<1x32xf32>
    %35 = vector.broadcast %34 : vector<1x32xf32> to vector<128x32xf32>
    %36 = arith.addf %33, %35 : vector<128x32xf32>
    %37 = vector.extract_strided_slice %32 {offsets = [0, 0], sizes = [128, 1], strides = [1, 1]} : vector<128x3xf32> to vector<128x1xf32>
    %38 = vector.broadcast %37 : vector<128x1xf32> to vector<128x32xf32>
    %39 = arith.mulf %36, %38 : vector<128x32xf32>
    %40 = vector.extract_strided_slice %31 {offsets = [0, 32], sizes = [128, 32], strides = [1, 1]} : vector<128x96xf32> to vector<128x32xf32>
    %41 = vector.extract_strided_slice %3 {offsets = [1, 0], sizes = [1, 32], strides = [1, 1]} : vector<3x32xf32> to vector<1x32xf32>
    %42 = vector.broadcast %41 : vector<1x32xf32> to vector<128x32xf32>
    %43 = arith.addf %40, %42 : vector<128x32xf32>
    %44 = vector.extract_strided_slice %32 {offsets = [0, 1], sizes = [128, 1], strides = [1, 1]} : vector<128x3xf32> to vector<128x1xf32>
    %45 = vector.broadcast %44 : vector<128x1xf32> to vector<128x32xf32>
    %46 = arith.mulf %43, %45 : vector<128x32xf32>
    %47 = arith.addf %39, %46 : vector<128x32xf32>
    %48 = vector.extract_strided_slice %31 {offsets = [0, 64], sizes = [128, 32], strides = [1, 1]} : vector<128x96xf32> to vector<128x32xf32>
    %49 = vector.extract_strided_slice %3 {offsets = [2, 0], sizes = [1, 32], strides = [1, 1]} : vector<3x32xf32> to vector<1x32xf32>
    %50 = vector.broadcast %49 : vector<1x32xf32> to vector<128x32xf32>
    %51 = arith.addf %48, %50 : vector<128x32xf32>
    %52 = vector.extract_strided_slice %32 {offsets = [0, 2], sizes = [128, 1], strides = [1, 1]} : vector<128x3xf32> to vector<128x1xf32>
    %53 = vector.broadcast %52 : vector<128x1xf32> to vector<128x32xf32>
    %54 = arith.mulf %51, %53 : vector<128x32xf32>
    %55 = arith.addf %47, %54 : vector<128x32xf32>
    %56 = vector.extract_strided_slice %0 {offsets = [0, 256], sizes = [128, 128], strides = [1, 1]} : vector<128x512xbf16> to vector<128x128xbf16>
    %cst_8 = arith.constant dense<0.000000e+00> : vector<128x96xf32>
    %57 = tpu.matmul %56, %2, %cst_8 {dimension_numbers = #tpu.dot_dimension_numbers<[1], [0], [0], [1], [0, 0, 1, 1], [], []>} : vector<128x128xbf16>, vector<128x96xbf16>, vector<128x96xf32> -> vector<128x96xf32>
    %58 = vector.extract_strided_slice %1 {offsets = [0, 6], sizes = [128, 3], strides = [1, 1]} : vector<128x12xf32> to vector<128x3xf32>
    %59 = vector.extract_strided_slice %57 {offsets = [0, 0], sizes = [128, 32], strides = [1, 1]} : vector<128x96xf32> to vector<128x32xf32>
    %60 = vector.extract_strided_slice %3 {offsets = [0, 0], sizes = [1, 32], strides = [1, 1]} : vector<3x32xf32> to vector<1x32xf32>
    %61 = vector.broadcast %60 : vector<1x32xf32> to vector<128x32xf32>
    %62 = arith.addf %59, %61 : vector<128x32xf32>
    %63 = vector.extract_strided_slice %58 {offsets = [0, 0], sizes = [128, 1], strides = [1, 1]} : vector<128x3xf32> to vector<128x1xf32>
    %64 = vector.broadcast %63 : vector<128x1xf32> to vector<128x32xf32>
    %65 = arith.mulf %62, %64 : vector<128x32xf32>
    %66 = vector.extract_strided_slice %57 {offsets = [0, 32], sizes = [128, 32], strides = [1, 1]} : vector<128x96xf32> to vector<128x32xf32>
    %67 = vector.extract_strided_slice %3 {offsets = [1, 0], sizes = [1, 32], strides = [1, 1]} : vector<3x32xf32> to vector<1x32xf32>
    %68 = vector.broadcast %67 : vector<1x32xf32> to vector<128x32xf32>
    %69 = arith.addf %66, %68 : vector<128x32xf32>
    %70 = vector.extract_strided_slice %58 {offsets = [0, 1], sizes = [128, 1], strides = [1, 1]} : vector<128x3xf32> to vector<128x1xf32>
    %71 = vector.broadcast %70 : vector<128x1xf32> to vector<128x32xf32>
    %72 = arith.mulf %69, %71 : vector<128x32xf32>
    %73 = arith.addf %65, %72 : vector<128x32xf32>
    %74 = vector.extract_strided_slice %57 {offsets = [0, 64], sizes = [128, 32], strides = [1, 1]} : vector<128x96xf32> to vector<128x32xf32>
    %75 = vector.extract_strided_slice %3 {offsets = [2, 0], sizes = [1, 32], strides = [1, 1]} : vector<3x32xf32> to vector<1x32xf32>
    %76 = vector.broadcast %75 : vector<1x32xf32> to vector<128x32xf32>
    %77 = arith.addf %74, %76 : vector<128x32xf32>
    %78 = vector.extract_strided_slice %58 {offsets = [0, 2], sizes = [128, 1], strides = [1, 1]} : vector<128x3xf32> to vector<128x1xf32>
    %79 = vector.broadcast %78 : vector<128x1xf32> to vector<128x32xf32>
    %80 = arith.mulf %77, %79 : vector<128x32xf32>
    %81 = arith.addf %73, %80 : vector<128x32xf32>
    %82 = vector.extract_strided_slice %0 {offsets = [0, 384], sizes = [128, 128], strides = [1, 1]} : vector<128x512xbf16> to vector<128x128xbf16>
    %cst_9 = arith.constant dense<0.000000e+00> : vector<128x96xf32>
    %83 = tpu.matmul %82, %2, %cst_9 {dimension_numbers = #tpu.dot_dimension_numbers<[1], [0], [0], [1], [0, 0, 1, 1], [], []>} : vector<128x128xbf16>, vector<128x96xbf16>, vector<128x96xf32> -> vector<128x96xf32>
    %84 = vector.extract_strided_slice %1 {offsets = [0, 9], sizes = [128, 3], strides = [1, 1]} : vector<128x12xf32> to vector<128x3xf32>
    %85 = vector.extract_strided_slice %83 {offsets = [0, 0], sizes = [128, 32], strides = [1, 1]} : vector<128x96xf32> to vector<128x32xf32>
    %86 = vector.extract_strided_slice %3 {offsets = [0, 0], sizes = [1, 32], strides = [1, 1]} : vector<3x32xf32> to vector<1x32xf32>
    %87 = vector.broadcast %86 : vector<1x32xf32> to vector<128x32xf32>
    %88 = arith.addf %85, %87 : vector<128x32xf32>
    %89 = vector.extract_strided_slice %84 {offsets = [0, 0], sizes = [128, 1], strides = [1, 1]} : vector<128x3xf32> to vector<128x1xf32>
    %90 = vector.broadcast %89 : vector<128x1xf32> to vector<128x32xf32>
    %91 = arith.mulf %88, %90 : vector<128x32xf32>
    %92 = vector.extract_strided_slice %83 {offsets = [0, 32], sizes = [128, 32], strides = [1, 1]} : vector<128x96xf32> to vector<128x32xf32>
    %93 = vector.extract_strided_slice %3 {offsets = [1, 0], sizes = [1, 32], strides = [1, 1]} : vector<3x32xf32> to vector<1x32xf32>
    %94 = vector.broadcast %93 : vector<1x32xf32> to vector<128x32xf32>
    %95 = arith.addf %92, %94 : vector<128x32xf32>
    %96 = vector.extract_strided_slice %84 {offsets = [0, 1], sizes = [128, 1], strides = [1, 1]} : vector<128x3xf32> to vector<128x1xf32>
    %97 = vector.broadcast %96 : vector<128x1xf32> to vector<128x32xf32>
    %98 = arith.mulf %95, %97 : vector<128x32xf32>
    %99 = arith.addf %91, %98 : vector<128x32xf32>
    %100 = vector.extract_strided_slice %83 {offsets = [0, 64], sizes = [128, 32], strides = [1, 1]} : vector<128x96xf32> to vector<128x32xf32>
    %101 = vector.extract_strided_slice %3 {offsets = [2, 0], sizes = [1, 32], strides = [1, 1]} : vector<3x32xf32> to vector<1x32xf32>
    %102 = vector.broadcast %101 : vector<1x32xf32> to vector<128x32xf32>
    %103 = arith.addf %100, %102 : vector<128x32xf32>
    %104 = vector.extract_strided_slice %84 {offsets = [0, 2], sizes = [128, 1], strides = [1, 1]} : vector<128x3xf32> to vector<128x1xf32>
    %105 = vector.broadcast %104 : vector<128x1xf32> to vector<128x32xf32>
    %106 = arith.mulf %103, %105 : vector<128x32xf32>
    %107 = arith.addf %99, %106 : vector<128x32xf32>
    %108 = tpu.concatenate %29, %55, %81, %107 in 1 : vector<128x32xf32>, vector<128x32xf32>, vector<128x32xf32>, vector<128x32xf32> -> vector<128x128xf32>
    %c0_10 = arith.constant 0 : index
    %c0_11 = arith.constant 0 : index
    %109 = vector.load %arg5[%c0_10, %c0_11] : memref<128x128xf32, #tpu.memory_space<vmem>>, vector<128x128xf32>
    tpu.vector_store %arg5[%c0_10, %c0_11], %108 {strides = array<i32>} : memref<128x128xf32, #tpu.memory_space<vmem>>, vector<128x128xf32>,
    return
  }
  func.func @transform_0(%arg0: i32) -> (i32, i32) {
    %c0_i32 = arith.constant 0 : i32
    %c0_i32_0 = arith.constant 0 : i32
    return %arg0, %c0_i32 : i32, i32
  }
  func.func @transform_1(%arg0: i32) -> (i32, i32) {
    %c0_i32 = arith.constant 0 : i32
    %c0_i32_0 = arith.constant 0 : i32
    return %arg0, %c0_i32 : i32, i32
  }
  func.func @transform_2(%arg0: i32) -> (i32, i32) {
    %c0_i32 = arith.constant 0 : i32
    %c0_i32_0 = arith.constant 0 : i32
    %c0_i32_1 = arith.constant 0 : i32
    return %c0_i32, %c0_i32_0 : i32, i32
  }
  func.func @transform_3(%arg0: i32) -> (i32, i32) {
    %c0_i32 = arith.constant 0 : i32
    %c0_i32_0 = arith.constant 0 : i32
    %c0_i32_1 = arith.constant 0 : i32
    return %c0_i32, %c0_i32_0 : i32, i32
  }
  func.func @transform_4(%arg0: i32) -> (i32, i32) {
    %c0_i32 = arith.constant 0 : i32
    %c0_i32_0 = arith.constant 0 : i32
    return %arg0, %c0_i32 : i32, i32
  }
}

</mosaic_0001>

<llo_original>
// kernel: group_embedding_forward.1
$region0: #{group_embedding_forward.1}
  #allocation0 [shape = 'u32[]', space=smem, size = 0x4, offset = 0x4, fixed_abs, tag = 'smem constant byte address 0x4 - core index']
  #allocation1 [shape = 'u32[72,128]{1,0:T(1,128)}', space=vmem, size = 0x9000, scoped, tag = 'internal scratch']
  %s0 = inlined_call_operand.vmem [shape: bf16[128,512], index: 0, kind: input, shape index: {}]
  %s1 = inlined_call_operand.vmem [shape: f32[128,12], index: 1, kind: input, shape index: {}]
  %s2 = inlined_call_operand.vmem [shape: bf16[128,96], index: 2, kind: input, shape index: {}]
  %s3 = inlined_call_operand.vmem [shape: f32[3,32], index: 3, kind: input, shape index: {}]
  %s4 = inlined_call_operand.vmem [shape: f32[128,128], index: 4, kind: output, shape index: {}]
  %s5 = sld [smem:[#allocation0]]
  $region26: #{group_embedding_forward.1} parent=0
    _
  %s7 = ssub.s32 1, %s5
  %s8 = scalar_select 0, %s7, %s5
  // Predicated region
  $region2: #{group_embedding_forward.1} parent=0 // pred_check
    _
  $region3: #{group_embedding_forward.1} parent=0 // pred_check_branch
    %10 = sbr.rel (0) target = $region5
  $region4: #{group_embedding_forward.1} parent=0 // pred_region
    _
  $region5: #{group_embedding_forward.1} parent=0 // pred_fallthru
    _
  // Predicated region
  $region6: #{group_embedding_forward.1} parent=0 // pred_check
    _
  $region7: #{group_embedding_forward.1} parent=0 // pred_check_branch
    %12 = sbr.rel (0) target = $region9
  $region8: #{group_embedding_forward.1} parent=0 // pred_region
    _
  $region9: #{group_embedding_forward.1} parent=0 // pred_fallthru
    _
  // Predicated region
  $region10: #{group_embedding_forward.1} parent=0 // pred_check
    _
  $region11: #{group_embedding_forward.1} parent=0 // pred_check_branch
    %14 = sbr.rel (0) target = $region13
  $region12: #{group_embedding_forward.1} parent=0 // pred_region
    _
  $region13: #{group_embedding_forward.1} parent=0 // pred_fallthru
    _
  // Predicated region
  $region14: #{group_embedding_forward.1} parent=0 // pred_check
    _
  $region15: #{group_embedding_forward.1} parent=0 // pred_check_branch
    %16 = sbr.rel (0) target = $region17
  $region16: #{group_embedding_forward.1} parent=0 // pred_region
    _
  $region17: #{group_embedding_forward.1} parent=0 // pred_fallthru
    _
  %v17 = vld [vmem:[%s0] sm:$0xff]
  %v18 = vld [vmem:[%s0 + $0x8] sm:$0xff]
  %v19 = vld [vmem:[%s0 + $0x10] sm:$0xff]
  %v20 = vld [vmem:[%s0 + $0x18] sm:$0xff]
  %v21 = vld [vmem:[%s0 + $0x20] sm:$0xff]
  %v22 = vld [vmem:[%s0 + $0x28] sm:$0xff]
  %v23 = vld [vmem:[%s0 + $0x30] sm:$0xff]
  %v24 = vld [vmem:[%s0 + $0x38] sm:$0xff]
  %v25 = vld [vmem:[%s0 + $0x40] sm:$0xff]
  %v26 = vld [vmem:[%s0 + $0x48] sm:$0xff]
  %v27 = vld [vmem:[%s0 + $0x50] sm:$0xff]
  %v28 = vld [vmem:[%s0 + $0x58] sm:$0xff]
  %v29 = vld [vmem:[%s0 + $0x60] sm:$0xff]
  %v30 = vld [vmem:[%s0 + $0x68] sm:$0xff]
  %v31 = vld [vmem:[%s0 + $0x70] sm:$0xff]
  %v32 = vld [vmem:[%s0 + $0x78] sm:$0xff]
  %v33 = vld [vmem:[%s0 + $0x80] sm:$0xff]
  %v34 = vld [vmem:[%s0 + $0x88] sm:$0xff]
  %v35 = vld [vmem:[%s0 + $0x90] sm:$0xff]
  %v36 = vld [vmem:[%s0 + $0x98] sm:$0xff]
  %v37 = vld [vmem:[%s0 + $0xa0] sm:$0xff]
  %v38 = vld [vmem:[%s0 + $0xa8] sm:$0xff]
  %v39 = vld [vmem:[%s0 + $0xb0] sm:$0xff]
  %v40 = vld [vmem:[%s0 + $0xb8] sm:$0xff]
  %v41 = vld [vmem:[%s0 + $0xc0] sm:$0xff]
  %v42 = vld [vmem:[%s0 + $0xc8] sm:$0xff]
  %v43 = vld [vmem:[%s0 + $0xd0] sm:$0xff]
  %v44 = vld [vmem:[%s0 + $0xd8] sm:$0xff]
  %v45 = vld [vmem:[%s0 + $0xe0] sm:$0xff]
  %v46 = vld [vmem:[%s0 + $0xe8] sm:$0xff]
  %v47 = vld [vmem:[%s0 + $0xf0] sm:$0xff]
  %v48 = vld [vmem:[%s0 + $0xf8] sm:$0xff]
  %v49 = vld [vmem:[%s1] sm:$0xff]
  %v50 = vld [vmem:[%s1 + $0x8] sm:$0xff]
  %v51 = vld [vmem:[%s1 + $0x10] sm:$0xff]
  %v52 = vld [vmem:[%s1 + $0x18] sm:$0xff]
  %v53 = vld [vmem:[%s1 + $0x20] sm:$0xff]
  %v54 = vld [vmem:[%s1 + $0x28] sm:$0xff]
  %v55 = vld [vmem:[%s1 + $0x30] sm:$0xff]
  %v56 = vld [vmem:[%s1 + $0x38] sm:$0xff]
  %v57 = vld [vmem:[%s1 + $0x40] sm:$0xff]
  %v58 = vld [vmem:[%s1 + $0x48] sm:$0xff]
  %v59 = vld [vmem:[%s1 + $0x50] sm:$0xff]
  %v60 = vld [vmem:[%s1 + $0x58] sm:$0xff]
  %v61 = vld [vmem:[%s1 + $0x60] sm:$0xff]
  %v62 = vld [vmem:[%s1 + $0x68] sm:$0xff]
  %v63 = vld [vmem:[%s1 + $0x70] sm:$0xff]
  %v64 = vld [vmem:[%s1 + $0x78] sm:$0xff]
  %v65 = vld [vmem:[%s2] sm:$0xf]
  %v66 = vld [vmem:[%s2 + $0x4] sm:$0xf]
  %v67 = vld [vmem:[%s2 + $0x8] sm:$0xf]
  %v68 = vld [vmem:[%s2 + $0xc] sm:$0xf]
  %v69 = vld [vmem:[%s2 + $0x10] sm:$0xf]
  %v70 = vld [vmem:[%s2 + $0x14] sm:$0xf]
  %v71 = vld [vmem:[%s2 + $0x18] sm:$0xf]
  %v72 = vld [vmem:[%s2 + $0x1c] sm:$0xf]
  %v73 = vld [vmem:[%s2 + $0x20] sm:$0xf]
  %v74 = vld [vmem:[%s2 + $0x24] sm:$0xf]
  %v75 = vld [vmem:[%s2 + $0x28] sm:$0xf]
  %v76 = vld [vmem:[%s2 + $0x2c] sm:$0xf]
  %v77 = vld [vmem:[%s2 + $0x30] sm:$0xf]
  %v78 = vld [vmem:[%s2 + $0x34] sm:$0xf]
  %v79 = vld [vmem:[%s2 + $0x38] sm:$0xf]
  %v80 = vld [vmem:[%s2 + $0x3c] sm:$0xf]
  %v81 = vld [vmem:[%s3] sm:$0x7]
  %v98 = vunpack.c.l.b16 %v17
  %v99 = vunpack.c.l.b16 %v19
  %v100 = vunpack.c.l.b16 %v21
  %v101 = vunpack.c.l.b16 %v23
  %v102 = vunpack.c.l.b16 %v25
  %v103 = vunpack.c.l.b16 %v27
  %v104 = vunpack.c.l.b16 %v29
  %v105 = vunpack.c.l.b16 %v31
  %v106 = vunpack.c.l.b16 %v33
  %v107 = vunpack.c.l.b16 %v35
  %v108 = vunpack.c.l.b16 %v37
  %v109 = vunpack.c.l.b16 %v39
  %v110 = vunpack.c.l.b16 %v41
  %v111 = vunpack.c.l.b16 %v43
  %v112 = vunpack.c.l.b16 %v45
  %v113 = vunpack.c.l.b16 %v47
  %v114 = vpack.c.b16 %v99, %v98
  %v115 = vpack.c.b16 %v101, %v100
  %v116 = vpack.c.b16 %v103, %v102
  %v117 = vpack.c.b16 %v105, %v104
  %v118 = vpack.c.b16 %v107, %v106
  %v119 = vpack.c.b16 %v109, %v108
  %v120 = vpack.c.b16 %v111, %v110
  %v121 = vpack.c.b16 %v113, %v112
  %v146 = vunpack.c.l.b16 %v65
  %v147 = vunpack.c.l.b16 %v66
  %v148 = vunpack.c.l.b16 %v67
  %v149 = vunpack.c.l.b16 %v68
  %v150 = vunpack.c.l.b16 %v69
  %v151 = vunpack.c.l.b16 %v70
  %v152 = vunpack.c.l.b16 %v71
  %v153 = vunpack.c.l.b16 %v72
  %v154 = vunpack.c.l.b16 %v73
  %v155 = vunpack.c.l.b16 %v74
  %v156 = vunpack.c.l.b16 %v75
  %v157 = vunpack.c.l.b16 %v76
  %v158 = vunpack.c.l.b16 %v77
  %v159 = vunpack.c.l.b16 %v78
  %v160 = vunpack.c.l.b16 %v79
  %v161 = vunpack.c.l.b16 %v80
  %v162 = vpack.c.b16 %v147, %v146
  %v163 = vpack.c.b16 %v149, %v148
  %v164 = vpack.c.b16 %v151, %v150
  %v165 = vpack.c.b16 %v153, %v152
  %v166 = vpack.c.b16 %v155, %v154
  %v167 = vpack.c.b16 %v157, %v156
  %v168 = vpack.c.b16 %v159, %v158
  %v169 = vpack.c.b16 %v161, %v160
  %178 = vmatpush.bf16.msra.mxu0 %v169
  %179 = vmatpush.bf16.msra.mxu0 %v168
  %180 = vmatpush.bf16.msra.mxu0 %v167
  %181 = vmatpush.bf16.msra.mxu0 %v166
  %182 = vmatpush.bf16.msra.mxu0 %v165
  %183 = vmatpush.bf16.msra.mxu0 %v164
  %184 = vmatpush.bf16.msra.mxu0 %v163
  %185 = vmatpush.bf16.msra.mxu0 %v162
  %186 = vmatmul.bf16.gmra.mxu0 %v114
  %v187 = vpop.f32.mrf.mxu0
  %v188 = vadd.f32 0.0, %v187
  %v189 = vpop.f32.mrf.mxu0
  %v190 = vadd.f32 0.0, %v189
  %191 = vmatmul.bf16.gmra.mxu0 %v115
  %v192 = vpop.f32.mrf.mxu0
  %v193 = vadd.f32 0.0, %v192
  %v194 = vpop.f32.mrf.mxu0
  %v195 = vadd.f32 0.0, %v194
  %196 = vmatmul.bf16.gmra.mxu0 %v116
  %v197 = vpop.f32.mrf.mxu0
  %v198 = vadd.f32 0.0, %v197
  %v199 = vpop.f32.mrf.mxu0
  %v200 = vadd.f32 0.0, %v199
  %201 = vmatmul.bf16.gmra.mxu0 %v117
  %v202 = vpop.f32.mrf.mxu0
  %v203 = vadd.f32 0.0, %v202
  %v204 = vpop.f32.mrf.mxu0
  %v205 = vadd.f32 0.0, %v204
  %206 = vmatmul.bf16.gmra.mxu0 %v118
  %v207 = vpop.f32.mrf.mxu0
  %v208 = vadd.f32 0.0, %v207
  %v209 = vpop.f32.mrf.mxu0
  %v210 = vadd.f32 0.0, %v209
  %211 = vmatmul.bf16.gmra.mxu0 %v119
  %v212 = vpop.f32.mrf.mxu0
  %v213 = vadd.f32 0.0, %v212
  %v214 = vpop.f32.mrf.mxu0
  %v215 = vadd.f32 0.0, %v214
  %216 = vmatmul.bf16.gmra.mxu0 %v120
  %v217 = vpop.f32.mrf.mxu0
  %v218 = vadd.f32 0.0, %v217
  %v219 = vpop.f32.mrf.mxu0
  %v220 = vadd.f32 0.0, %v219
  %221 = vmatmul.bf16.gmra.mxu0 %v121
  %v222 = vpop.f32.mrf.mxu0
  %v223 = vadd.f32 0.0, %v222
  %v224 = vpop.f32.mrf.mxu0
  %v225 = vadd.f32 0.0, %v224
  %226 = vdwg.mxu0
  %v227 = vperm.slane %v81, 0
  %v228 = vadd.f32 %v188, %v227
  %v229 = vadd.f32 %v190, %v227
  %v230 = vadd.f32 %v193, %v227
  %v231 = vadd.f32 %v195, %v227
  %v232 = vadd.f32 %v198, %v227
  %v233 = vadd.f32 %v200, %v227
  %v234 = vadd.f32 %v203, %v227
  %v235 = vadd.f32 %v205, %v227
  %v236 = vadd.f32 %v208, %v227
  %v237 = vadd.f32 %v210, %v227
  %v238 = vadd.f32 %v213, %v227
  %v239 = vadd.f32 %v215, %v227
  %v240 = vadd.f32 %v218, %v227
  %v241 = vadd.f32 %v220, %v227
  %v242 = vadd.f32 %v223, %v227
  %v243 = vadd.f32 %v225, %v227
  %245 = vset.pattern.permute.xlu0 0
  %246 = vperm.xlu0 %245, %v49
  %v247 = vpop.permute.xlu0 %246
  %250 = vset.pattern.permute.xlu0 0
  %251 = vperm.xlu0 %250, %v50
  %v252 = vpop.permute.xlu0 %251
  %255 = vset.pattern.permute.xlu0 0
  %256 = vperm.xlu0 %255, %v51
  %v257 = vpop.permute.xlu0 %256
  %260 = vset.pattern.permute.xlu0 0
  %261 = vperm.xlu0 %260, %v52
  %v262 = vpop.permute.xlu0 %261
  %265 = vset.pattern.permute.xlu0 0
  %266 = vperm.xlu0 %265, %v53
  %v267 = vpop.permute.xlu0 %266
  %270 = vset.pattern.permute.xlu0 0
  %271 = vperm.xlu0 %270, %v54
  %v272 = vpop.permute.xlu0 %271
  %275 = vset.pattern.permute.xlu0 0
  %276 = vperm.xlu0 %275, %v55
  %v277 = vpop.permute.xlu0 %276
  %280 = vset.pattern.permute.xlu0 0
  %281 = vperm.xlu0 %280, %v56
  %v282 = vpop.permute.xlu0 %281
  %285 = vset.pattern.permute.xlu0 0
  %286 = vperm.xlu0 %285, %v57
  %v287 = vpop.permute.xlu0 %286
  %290 = vset.pattern.permute.xlu0 0
  %291 = vperm.xlu0 %290, %v58
  %v292 = vpop.permute.xlu0 %291
  %295 = vset.pattern.permute.xlu0 0
  %296 = vperm.xlu0 %295, %v59
  %v297 = vpop.permute.xlu0 %296
  %300 = vset.pattern.permute.xlu0 0
  %301 = vperm.xlu0 %300, %v60
  %v302 = vpop.permute.xlu0 %301
  %305 = vset.pattern.permute.xlu0 0
  %306 = vperm.xlu0 %305, %v61
  %v307 = vpop.permute.xlu0 %306
  %310 = vset.pattern.permute.xlu0 0
  %311 = vperm.xlu0 %310, %v62
  %v312 = vpop.permute.xlu0 %311
  %315 = vset.pattern.permute.xlu0 0
  %316 = vperm.xlu0 %315, %v63
  %v317 = vpop.permute.xlu0 %316
  %320 = vset.pattern.permute.xlu0 0
  %321 = vperm.xlu0 %320, %v64
  %v322 = vpop.permute.xlu0 %321
  %v324 = vmul.f32 %v228, %v247
  %v325 = vmul.f32 %v229, %v252
  %v326 = vmul.f32 %v230, %v257
  %v327 = vmul.f32 %v231, %v262
  %v328 = vmul.f32 %v232, %v267
  %v329 = vmul.f32 %v233, %v272
  %v330 = vmul.f32 %v234, %v277
  %v331 = vmul.f32 %v235, %v282
  %v332 = vmul.f32 %v236, %v287
  %v333 = vmul.f32 %v237, %v292
  %v334 = vmul.f32 %v238, %v297
  %v335 = vmul.f32 %v239, %v302
  %v336 = vmul.f32 %v240, %v307
  %v337 = vmul.f32 %v241, %v312
  %v338 = vmul.f32 %v242, %v317
  %v339 = vmul.f32 %v243, %v322
  %v340 = vperm.slane %v81, 1
  %342 = vrot.lane.b32.xlu0 %v340, 32
  %v343 = vpop.permute.xlu0 %342
  %v345 = vadd.f32 %v188, %v343
  %v346 = vadd.f32 %v190, %v343
  %v347 = vadd.f32 %v193, %v343
  %v348 = vadd.f32 %v195, %v343
  %v349 = vadd.f32 %v198, %v343
  %v350 = vadd.f32 %v200, %v343
  %v351 = vadd.f32 %v203, %v343
  %v352 = vadd.f32 %v205, %v343
  %v353 = vadd.f32 %v208, %v343
  %v354 = vadd.f32 %v210, %v343
  %v355 = vadd.f32 %v213, %v343
  %v356 = vadd.f32 %v215, %v343
  %v357 = vadd.f32 %v218, %v343
  %v358 = vadd.f32 %v220, %v343
  %v359 = vadd.f32 %v223, %v343
  %v360 = vadd.f32 %v225, %v343
  %361 = vset.pattern.permute.xlu0 1
  %362 = vperm.xlu0 %361, %v49
  %v363 = vpop.permute.xlu0 %362
  %365 = vset.pattern.permute.xlu0 1
  %366 = vperm.xlu0 %365, %v50
  %v367 = vpop.permute.xlu0 %366
  %369 = vset.pattern.permute.xlu0 1
  %370 = vperm.xlu0 %369, %v51
  %v371 = vpop.permute.xlu0 %370
  %373 = vset.pattern.permute.xlu0 1
  %374 = vperm.xlu0 %373, %v52
  %v375 = vpop.permute.xlu0 %374
  %377 = vset.pattern.permute.xlu0 1
  %378 = vperm.xlu0 %377, %v53
  %v379 = vpop.permute.xlu0 %378
  %381 = vset.pattern.permute.xlu0 1
  %382 = vperm.xlu0 %381, %v54
  %v383 = vpop.permute.xlu0 %382
  %385 = vset.pattern.permute.xlu0 1
  %386 = vperm.xlu0 %385, %v55
  %v387 = vpop.permute.xlu0 %386
  %389 = vset.pattern.permute.xlu0 1
  %390 = vperm.xlu0 %389, %v56
  %v391 = vpop.permute.xlu0 %390
  %393 = vset.pattern.permute.xlu0 1
  %394 = vperm.xlu0 %393, %v57
  %v395 = vpop.permute.xlu0 %394
  %397 = vset.pattern.permute.xlu0 1
  %398 = vperm.xlu0 %397, %v58
  %v399 = vpop.permute.xlu0 %398
  %401 = vset.pattern.permute.xlu0 1
  %402 = vperm.xlu0 %401, %v59
  %v403 = vpop.permute.xlu0 %402
  %405 = vset.pattern.permute.xlu0 1
  %406 = vperm.xlu0 %405, %v60
  %v407 = vpop.permute.xlu0 %406
  %409 = vset.pattern.permute.xlu0 1
  %410 = vperm.xlu0 %409, %v61
  %v411 = vpop.permute.xlu0 %410
  %413 = vset.pattern.permute.xlu0 1
  %414 = vperm.xlu0 %413, %v62
  %v415 = vpop.permute.xlu0 %414
  %417 = vset.pattern.permute.xlu0 1
  %418 = vperm.xlu0 %417, %v63
  %v419 = vpop.permute.xlu0 %418
  %421 = vset.pattern.permute.xlu0 1
  %422 = vperm.xlu0 %421, %v64
  %v423 = vpop.permute.xlu0 %422
  %v425 = vmul.f32 %v345, %v363
  %v426 = vmul.f32 %v346, %v367
  %v427 = vmul.f32 %v347, %v371
  %v428 = vmul.f32 %v348, %v375
  %v429 = vmul.f32 %v349, %v379
  %v430 = vmul.f32 %v350, %v383
  %v431 = vmul.f32 %v351, %v387
  %v432 = vmul.f32 %v352, %v391
  %v433 = vmul.f32 %v353, %v395
  %v434 = vmul.f32 %v354, %v399
  %v435 = vmul.f32 %v355, %v403
  %v436 = vmul.f32 %v356, %v407
  %v437 = vmul.f32 %v357, %v411
  %v438 = vmul.f32 %v358, %v415
  %v439 = vmul.f32 %v359, %v419
  %v440 = vmul.f32 %v360, %v423
  %457 = vrot.lane.b32.xlu0 %v425, 96
  %v458 = vpop.permute.xlu0 %457
  %459 = vrot.lane.b32.xlu0 %v426, 96
  %v460 = vpop.permute.xlu0 %459
  %461 = vrot.lane.b32.xlu0 %v427, 96
  %v462 = vpop.permute.xlu0 %461
  %463 = vrot.lane.b32.xlu0 %v428, 96
  %v464 = vpop.permute.xlu0 %463
  %465 = vrot.lane.b32.xlu0 %v429, 96
  %v466 = vpop.permute.xlu0 %465
  %467 = vrot.lane.b32.xlu0 %v430, 96
  %v468 = vpop.permute.xlu0 %467
  %469 = vrot.lane.b32.xlu0 %v431, 96
  %v470 = vpop.permute.xlu0 %469
  %471 = vrot.lane.b32.xlu0 %v432, 96
  %v472 = vpop.permute.xlu0 %471
  %473 = vrot.lane.b32.xlu0 %v433, 96
  %v474 = vpop.permute.xlu0 %473
  %475 = vrot.lane.b32.xlu0 %v434, 96
  %v476 = vpop.permute.xlu0 %475
  %477 = vrot.lane.b32.xlu0 %v435, 96
  %v478 = vpop.permute.xlu0 %477
  %479 = vrot.lane.b32.xlu0 %v436, 96
  %v480 = vpop.permute.xlu0 %479
  %481 = vrot.lane.b32.xlu0 %v437, 96
  %v482 = vpop.permute.xlu0 %481
  %483 = vrot.lane.b32.xlu0 %v438, 96
  %v484 = vpop.permute.xlu0 %483
  %485 = vrot.lane.b32.xlu0 %v439, 96
  %v486 = vpop.permute.xlu0 %485
  %487 = vrot.lane.b32.xlu0 %v440, 96
  %v488 = vpop.permute.xlu0 %487
  %v505 = vadd.f32 %v324, %v458
  %v506 = vadd.f32 %v325, %v460
  %v507 = vadd.f32 %v326, %v462
  %v508 = vadd.f32 %v327, %v464
  %v509 = vadd.f32 %v328, %v466
  %v510 = vadd.f32 %v329, %v468
  %v511 = vadd.f32 %v330, %v470
  %v512 = vadd.f32 %v331, %v472
  %v513 = vadd.f32 %v332, %v474
  %v514 = vadd.f32 %v333, %v476
  %v515 = vadd.f32 %v334, %v478
  %v516 = vadd.f32 %v335, %v480
  %v517 = vadd.f32 %v336, %v482
  %v518 = vadd.f32 %v337, %v484
  %v519 = vadd.f32 %v338, %v486
  %v520 = vadd.f32 %v339, %v488
  %v521 = vperm.slane %v81, 2
  %523 = vrot.lane.b32.xlu0 %v521, 64
  %v524 = vpop.permute.xlu0 %523
  %v526 = vadd.f32 %v188, %v524
  %v527 = vadd.f32 %v190, %v524
  %v528 = vadd.f32 %v193, %v524
  %v529 = vadd.f32 %v195, %v524
  %v530 = vadd.f32 %v198, %v524
  %v531 = vadd.f32 %v200, %v524
  %v532 = vadd.f32 %v203, %v524
  %v533 = vadd.f32 %v205, %v524
  %v534 = vadd.f32 %v208, %v524
  %v535 = vadd.f32 %v210, %v524
  %v536 = vadd.f32 %v213, %v524
  %v537 = vadd.f32 %v215, %v524
  %v538 = vadd.f32 %v218, %v524
  %v539 = vadd.f32 %v220, %v524
  %v540 = vadd.f32 %v223, %v524
  %v541 = vadd.f32 %v225, %v524
  %542 = vset.pattern.permute.xlu0 2
  %543 = vperm.xlu0 %542, %v49
  %v544 = vpop.permute.xlu0 %543
  %546 = vset.pattern.permute.xlu0 2
  %547 = vperm.xlu0 %546, %v50
  %v548 = vpop.permute.xlu0 %547
  %550 = vset.pattern.permute.xlu0 2
  %551 = vperm.xlu0 %550, %v51
  %v552 = vpop.permute.xlu0 %551
  %554 = vset.pattern.permute.xlu0 2
  %555 = vperm.xlu0 %554, %v52
  %v556 = vpop.permute.xlu0 %555
  %558 = vset.pattern.permute.xlu0 2
  %559 = vperm.xlu0 %558, %v53
  %v560 = vpop.permute.xlu0 %559
  %562 = vset.pattern.permute.xlu0 2
  %563 = vperm.xlu0 %562, %v54
  %v564 = vpop.permute.xlu0 %563
  %566 = vset.pattern.permute.xlu0 2
  %567 = vperm.xlu0 %566, %v55
  %v568 = vpop.permute.xlu0 %567
  %570 = vset.pattern.permute.xlu0 2
  %571 = vperm.xlu0 %570, %v56
  %v572 = vpop.permute.xlu0 %571
  %574 = vset.pattern.permute.xlu0 2
  %575 = vperm.xlu0 %574, %v57
  %v576 = vpop.permute.xlu0 %575
  %578 = vset.pattern.permute.xlu0 2
  %579 = vperm.xlu0 %578, %v58
  %v580 = vpop.permute.xlu0 %579
  %582 = vset.pattern.permute.xlu0 2
  %583 = vperm.xlu0 %582, %v59
  %v584 = vpop.permute.xlu0 %583
  %586 = vset.pattern.permute.xlu0 2
  %587 = vperm.xlu0 %586, %v60
  %v588 = vpop.permute.xlu0 %587
  %590 = vset.pattern.permute.xlu0 2
  %591 = vperm.xlu0 %590, %v61
  %v592 = vpop.permute.xlu0 %591
  %594 = vset.pattern.permute.xlu0 2
  %595 = vperm.xlu0 %594, %v62
  %v596 = vpop.permute.xlu0 %595
  %598 = vset.pattern.permute.xlu0 2
  %599 = vperm.xlu0 %598, %v63
  %v600 = vpop.permute.xlu0 %599
  %602 = vset.pattern.permute.xlu0 2
  %603 = vperm.xlu0 %602, %v64
  %v604 = vpop.permute.xlu0 %603
  %v606 = vmul.f32 %v526, %v544
  %v607 = vmul.f32 %v527, %v548
  %v608 = vmul.f32 %v528, %v552
  %v609 = vmul.f32 %v529, %v556
  %v610 = vmul.f32 %v530, %v560
  %v611 = vmul.f32 %v531, %v564
  %v612 = vmul.f32 %v532, %v568
  %v613 = vmul.f32 %v533, %v572
  %v614 = vmul.f32 %v534, %v576
  %v615 = vmul.f32 %v535, %v580
  %v616 = vmul.f32 %v536, %v584
  %v617 = vmul.f32 %v537, %v588
  %v618 = vmul.f32 %v538, %v592
  %v619 = vmul.f32 %v539, %v596
  %v620 = vmul.f32 %v540, %v600
  %v621 = vmul.f32 %v541, %v604
  %638 = vrot.lane.b32.xlu0 %v606, 64
  %v639 = vpop.permute.xlu0 %638
  %640 = vrot.lane.b32.xlu0 %v607, 64
  %v641 = vpop.permute.xlu0 %640
  %642 = vrot.lane.b32.xlu0 %v608, 64
  %v643 = vpop.permute.xlu0 %642
  %644 = vrot.lane.b32.xlu0 %v609, 64
  %v645 = vpop.permute.xlu0 %644
  %646 = vrot.lane.b32.xlu0 %v610, 64
  %v647 = vpop.permute.xlu0 %646
  %648 = vrot.lane.b32.xlu0 %v611, 64
  %v649 = vpop.permute.xlu0 %648
  %650 = vrot.lane.b32.xlu0 %v612, 64
  %v651 = vpop.permute.xlu0 %650
  %652 = vrot.lane.b32.xlu0 %v613, 64
  %v653 = vpop.permute.xlu0 %652
  %654 = vrot.lane.b32.xlu0 %v614, 64
  %v655 = vpop.permute.xlu0 %654
  %656 = vrot.lane.b32.xlu0 %v615, 64
  %v657 = vpop.permute.xlu0 %656
  %658 = vrot.lane.b32.xlu0 %v616, 64
  %v659 = vpop.permute.xlu0 %658
  %660 = vrot.lane.b32.xlu0 %v617, 64
  %v661 = vpop.permute.xlu0 %660
  %662 = vrot.lane.b32.xlu0 %v618, 64
  %v663 = vpop.permute.xlu0 %662
  %664 = vrot.lane.b32.xlu0 %v619, 64
  %v665 = vpop.permute.xlu0 %664
  %666 = vrot.lane.b32.xlu0 %v620, 64
  %v667 = vpop.permute.xlu0 %666
  %668 = vrot.lane.b32.xlu0 %v621, 64
  %v669 = vpop.permute.xlu0 %668
  %v686 = vadd.f32 %v505, %v639
  %v687 = vadd.f32 %v506, %v641
  %v688 = vadd.f32 %v507, %v643
  %v689 = vadd.f32 %v508, %v645
  %v690 = vadd.f32 %v509, %v647
  %v691 = vadd.f32 %v510, %v649
  %v692 = vadd.f32 %v511, %v651
  %v693 = vadd.f32 %v512, %v653
  %v694 = vadd.f32 %v513, %v655
  %v695 = vadd.f32 %v514, %v657
  %v696 = vadd.f32 %v515, %v659
  %v697 = vadd.f32 %v516, %v661
  %v698 = vadd.f32 %v517, %v663
  %v699 = vadd.f32 %v518, %v665
  %v700 = vadd.f32 %v519, %v667
  %v701 = vadd.f32 %v520, %v669
  %v702 = vunpack.c.h.b16 %v17
  %v703 = vunpack.c.h.b16 %v19
  %v704 = vunpack.c.h.b16 %v21
  %v705 = vunpack.c.h.b16 %v23
  %v706 = vunpack.c.h.b16 %v25
  %v707 = vunpack.c.h.b16 %v27
  %v708 = vunpack.c.h.b16 %v29
  %v709 = vunpack.c.h.b16 %v31
  %v710 = vunpack.c.h.b16 %v33
  %v711 = vunpack.c.h.b16 %v35
  %v712 = vunpack.c.h.b16 %v37
  %v713 = vunpack.c.h.b16 %v39
  %v714 = vunpack.c.h.b16 %v41
  %v715 = vunpack.c.h.b16 %v43
  %v716 = vunpack.c.h.b16 %v45
  %v717 = vunpack.c.h.b16 %v47
  %v718 = vpack.c.b16 %v703, %v702
  %v719 = vpack.c.b16 %v705, %v704
  %v720 = vpack.c.b16 %v707, %v706
  %v721 = vpack.c.b16 %v709, %v708
  %v722 = vpack.c.b16 %v711, %v710
  %v723 = vpack.c.b16 %v713, %v712
  %v724 = vpack.c.b16 %v715, %v714
  %v725 = vpack.c.b16 %v717, %v716
  %734 = vmatpush.bf16.msra.mxu0 %v169
  %735 = vmatpush.bf16.msra.mxu0 %v168
  %736 = vmatpush.bf16.msra.mxu0 %v167
  %737 = vmatpush.bf16.msra.mxu0 %v166
  %738 = vmatpush.bf16.msra.mxu0 %v165
  %739 = vmatpush.bf16.msra.mxu0 %v164
  %740 = vmatpush.bf16.msra.mxu0 %v163
  %741 = vmatpush.bf16.msra.mxu0 %v162
  %742 = vmatmul.bf16.gmra.mxu0 %v718
  %v743 = vpop.f32.mrf.mxu0
  %v744 = vadd.f32 0.0, %v743
  %v745 = vpop.f32.mrf.mxu0
  %v746 = vadd.f32 0.0, %v745
  %747 = vmatmul.bf16.gmra.mxu0 %v719
  %v748 = vpop.f32.mrf.mxu0
  %v749 = vadd.f32 0.0, %v748
  %v750 = vpop.f32.mrf.mxu0
  %v751 = vadd.f32 0.0, %v750
  %752 = vmatmul.bf16.gmra.mxu0 %v720
  %v753 = vpop.f32.mrf.mxu0
  %v754 = vadd.f32 0.0, %v753
  %v755 = vpop.f32.mrf.mxu0
  %v756 = vadd.f32 0.0, %v755
  %757 = vmatmul.bf16.gmra.mxu0 %v721
  %v758 = vpop.f32.mrf.mxu0
  %v759 = vadd.f32 0.0, %v758
  %v760 = vpop.f32.mrf.mxu0
  %v761 = vadd.f32 0.0, %v760
  %762 = vmatmul.bf16.gmra.mxu0 %v722
  %v763 = vpop.f32.mrf.mxu0
  %v764 = vadd.f32 0.0, %v763
  %v765 = vpop.f32.mrf.mxu0
  %v766 = vadd.f32 0.0, %v765
  %767 = vmatmul.bf16.gmra.mxu0 %v723
  %v768 = vpop.f32.mrf.mxu0
  %v769 = vadd.f32 0.0, %v768
  %v770 = vpop.f32.mrf.mxu0
  %v771 = vadd.f32 0.0, %v770
  %772 = vmatmul.bf16.gmra.mxu0 %v724
  %v773 = vpop.f32.mrf.mxu0
  %v774 = vadd.f32 0.0, %v773
  %v775 = vpop.f32.mrf.mxu0
  %v776 = vadd.f32 0.0, %v775
  %777 = vmatmul.bf16.gmra.mxu0 %v725
  %v778 = vpop.f32.mrf.mxu0
  %v779 = vadd.f32 0.0, %v778
  %v780 = vpop.f32.mrf.mxu0
  %v781 = vadd.f32 0.0, %v780
  %782 = vdwg.mxu0
  %v783 = vadd.f32 %v744, %v227
  %v784 = vadd.f32 %v746, %v227
  %v785 = vadd.f32 %v749, %v227
  %v786 = vadd.f32 %v751, %v227
  %v787 = vadd.f32 %v754, %v227
  %v788 = vadd.f32 %v756, %v227
  %v789 = vadd.f32 %v759, %v227
  %v790 = vadd.f32 %v761, %v227
  %v791 = vadd.f32 %v764, %v227
  %v792 = vadd.f32 %v766, %v227
  %v793 = vadd.f32 %v769, %v227
  %v794 = vadd.f32 %v771, %v227
  %v795 = vadd.f32 %v774, %v227
  %v796 = vadd.f32 %v776, %v227
  %v797 = vadd.f32 %v779, %v227
  %v798 = vadd.f32 %v781, %v227
  %799 = vset.pattern.permute.xlu0 3
  %800 = vperm.xlu0 %799, %v49
  %v801 = vpop.permute.xlu0 %800
  %803 = vset.pattern.permute.xlu0 3
  %804 = vperm.xlu0 %803, %v50
  %v805 = vpop.permute.xlu0 %804
  %807 = vset.pattern.permute.xlu0 3
  %808 = vperm.xlu0 %807, %v51
  %v809 = vpop.permute.xlu0 %808
  %811 = vset.pattern.permute.xlu0 3
  %812 = vperm.xlu0 %811, %v52
  %v813 = vpop.permute.xlu0 %812
  %815 = vset.pattern.permute.xlu0 3
  %816 = vperm.xlu0 %815, %v53
  %v817 = vpop.permute.xlu0 %816
  %819 = vset.pattern.permute.xlu0 3
  %820 = vperm.xlu0 %819, %v54
  %v821 = vpop.permute.xlu0 %820
  %823 = vset.pattern.permute.xlu0 3
  %824 = vperm.xlu0 %823, %v55
  %v825 = vpop.permute.xlu0 %824
  %827 = vset.pattern.permute.xlu0 3
  %828 = vperm.xlu0 %827, %v56
  %v829 = vpop.permute.xlu0 %828
  %831 = vset.pattern.permute.xlu0 3
  %832 = vperm.xlu0 %831, %v57
  %v833 = vpop.permute.xlu0 %832
  %835 = vset.pattern.permute.xlu0 3
  %836 = vperm.xlu0 %835, %v58
  %v837 = vpop.permute.xlu0 %836
  %839 = vset.pattern.permute.xlu0 3
  %840 = vperm.xlu0 %839, %v59
  %v841 = vpop.permute.xlu0 %840
  %843 = vset.pattern.permute.xlu0 3
  %844 = vperm.xlu0 %843, %v60
  %v845 = vpop.permute.xlu0 %844
  %847 = vset.pattern.permute.xlu0 3
  %848 = vperm.xlu0 %847, %v61
  %v849 = vpop.permute.xlu0 %848
  %851 = vset.pattern.permute.xlu0 3
  %852 = vperm.xlu0 %851, %v62
  %v853 = vpop.permute.xlu0 %852
  %855 = vset.pattern.permute.xlu0 3
  %856 = vperm.xlu0 %855, %v63
  %v857 = vpop.permute.xlu0 %856
  %859 = vset.pattern.permute.xlu0 3
  %860 = vperm.xlu0 %859, %v64
  %v861 = vpop.permute.xlu0 %860
  %v863 = vmul.f32 %v783, %v801
  %v864 = vmul.f32 %v784, %v805
  %v865 = vmul.f32 %v785, %v809
  %v866 = vmul.f32 %v786, %v813
  %v867 = vmul.f32 %v787, %v817
  %v868 = vmul.f32 %v788, %v821
  %v869 = vmul.f32 %v789, %v825
  %v870 = vmul.f32 %v790, %v829
  %v871 = vmul.f32 %v791, %v833
  %v872 = vmul.f32 %v792, %v837
  %v873 = vmul.f32 %v793, %v841
  %v874 = vmul.f32 %v794, %v845
  %v875 = vmul.f32 %v795, %v849
  %v876 = vmul.f32 %v796, %v853
  %v877 = vmul.f32 %v797, %v857
  %v878 = vmul.f32 %v798, %v861
  %v879 = vadd.f32 %v744, %v343
  %v880 = vadd.f32 %v746, %v343
  %v881 = vadd.f32 %v749, %v343
  %v882 = vadd.f32 %v751, %v343
  %v883 = vadd.f32 %v754, %v343
  %v884 = vadd.f32 %v756, %v343
  %v885 = vadd.f32 %v759, %v343
  %v886 = vadd.f32 %v761, %v343
  %v887 = vadd.f32 %v764, %v343
  %v888 = vadd.f32 %v766, %v343
  %v889 = vadd.f32 %v769, %v343
  %v890 = vadd.f32 %v771, %v343
  %v891 = vadd.f32 %v774, %v343
  %v892 = vadd.f32 %v776, %v343
  %v893 = vadd.f32 %v779, %v343
  %v894 = vadd.f32 %v781, %v343
  %895 = vset.pattern.permute.xlu0 4
  %896 = vperm.xlu0 %895, %v49
  %v897 = vpop.permute.xlu0 %896
  %899 = vset.pattern.permute.xlu0 4
  %900 = vperm.xlu0 %899, %v50
  %v901 = vpop.permute.xlu0 %900
  %903 = vset.pattern.permute.xlu0 4
  %904 = vperm.xlu0 %903, %v51
  %v905 = vpop.permute.xlu0 %904
  %907 = vset.pattern.permute.xlu0 4
  %908 = vperm.xlu0 %907, %v52
  %v909 = vpop.permute.xlu0 %908
  %911 = vset.pattern.permute.xlu0 4
  %912 = vperm.xlu0 %911, %v53
  %v913 = vpop.permute.xlu0 %912
  %915 = vset.pattern.permute.xlu0 4
  %916 = vperm.xlu0 %915, %v54
  %v917 = vpop.permute.xlu0 %916
  %919 = vset.pattern.permute.xlu0 4
  %920 = vperm.xlu0 %919, %v55
  %v921 = vpop.permute.xlu0 %920
  %923 = vset.pattern.permute.xlu0 4
  %924 = vperm.xlu0 %923, %v56
  %v925 = vpop.permute.xlu0 %924
  %927 = vset.pattern.permute.xlu0 4
  %928 = vperm.xlu0 %927, %v57
  %v929 = vpop.permute.xlu0 %928
  %931 = vset.pattern.permute.xlu0 4
  %932 = vperm.xlu0 %931, %v58
  %v933 = vpop.permute.xlu0 %932
  %935 = vset.pattern.permute.xlu0 4
  %936 = vperm.xlu0 %935, %v59
  %v937 = vpop.permute.xlu0 %936
  %939 = vset.pattern.permute.xlu0 4
  %940 = vperm.xlu0 %939, %v60
  %v941 = vpop.permute.xlu0 %940
  %943 = vset.pattern.permute.xlu0 4
  %944 = vperm.xlu0 %943, %v61
  %v945 = vpop.permute.xlu0 %944
  %947 = vset.pattern.permute.xlu0 4
  %948 = vperm.xlu0 %947, %v62
  %v949 = vpop.permute.xlu0 %948
  %951 = vset.pattern.permute.xlu0 4
  %952 = vperm.xlu0 %951, %v63
  %v953 = vpop.permute.xlu0 %952
  %955 = vset.pattern.permute.xlu0 4
  %956 = vperm.xlu0 %955, %v64
  %v957 = vpop.permute.xlu0 %956
  %v959 = vmul.f32 %v879, %v897
  %v960 = vmul.f32 %v880, %v901
  %v961 = vmul.f32 %v881, %v905
  %v962 = vmul.f32 %v882, %v909
  %v963 = vmul.f32 %v883, %v913
  %v964 = vmul.f32 %v884, %v917
  %v965 = vmul.f32 %v885, %v921
  %v966 = vmul.f32 %v886, %v925
  %v967 = vmul.f32 %v887, %v929
  %v968 = vmul.f32 %v888, %v933
  %v969 = vmul.f32 %v889, %v937
  %v970 = vmul.f32 %v890, %v941
  %v971 = vmul.f32 %v891, %v945
  %v972 = vmul.f32 %v892, %v949
  %v973 = vmul.f32 %v893, %v953
  %v974 = vmul.f32 %v894, %v957
  %991 = vrot.lane.b32.xlu0 %v959, 96
  %v992 = vpop.permute.xlu0 %991
  %993 = vrot.lane.b32.xlu0 %v960, 96
  %v994 = vpop.permute.xlu0 %993
  %995 = vrot.lane.b32.xlu0 %v961, 96
  %v996 = vpop.permute.xlu0 %995
  %997 = vrot.lane.b32.xlu0 %v962, 96
  %v998 = vpop.permute.xlu0 %997
  %999 = vrot.lane.b32.xlu0 %v963, 96
  %v1000 = vpop.permute.xlu0 %999
  %1001 = vrot.lane.b32.xlu0 %v964, 96
  %v1002 = vpop.permute.xlu0 %1001
  %1003 = vrot.lane.b32.xlu0 %v965, 96
  %v1004 = vpop.permute.xlu0 %1003
  %1005 = vrot.lane.b32.xlu0 %v966, 96
  %v1006 = vpop.permute.xlu0 %1005
  %1007 = vrot.lane.b32.xlu0 %v967, 96
  %v1008 = vpop.permute.xlu0 %1007
  %1009 = vrot.lane.b32.xlu0 %v968, 96
  %v1010 = vpop.permute.xlu0 %1009
  %1011 = vrot.lane.b32.xlu0 %v969, 96
  %v1012 = vpop.permute.xlu0 %1011
  %1013 = vrot.lane.b32.xlu0 %v970, 96
  %v1014 = vpop.permute.xlu0 %1013
  %1015 = vrot.lane.b32.xlu0 %v971, 96
  %v1016 = vpop.permute.xlu0 %1015
  %1017 = vrot.lane.b32.xlu0 %v972, 96
  %v1018 = vpop.permute.xlu0 %1017
  %1019 = vrot.lane.b32.xlu0 %v973, 96
  %v1020 = vpop.permute.xlu0 %1019
  %1021 = vrot.lane.b32.xlu0 %v974, 96
  %v1022 = vpop.permute.xlu0 %1021
  %v1039 = vadd.f32 %v863, %v992
  %v1040 = vadd.f32 %v864, %v994
  %v1041 = vadd.f32 %v865, %v996
  %v1042 = vadd.f32 %v866, %v998
  %v1043 = vadd.f32 %v867, %v1000
  %v1044 = vadd.f32 %v868, %v1002
  %v1045 = vadd.f32 %v869, %v1004
  %v1046 = vadd.f32 %v870, %v1006
  %v1047 = vadd.f32 %v871, %v1008
  %v1048 = vadd.f32 %v872, %v1010
  %v1049 = vadd.f32 %v873, %v1012
  %v1050 = vadd.f32 %v874, %v1014
  %v1051 = vadd.f32 %v875, %v1016
  %v1052 = vadd.f32 %v876, %v1018
  %v1053 = vadd.f32 %v877, %v1020
  %v1054 = vadd.f32 %v878, %v1022
  %v1055 = vadd.f32 %v744, %v524
  %v1056 = vadd.f32 %v746, %v524
  %v1057 = vadd.f32 %v749, %v524
  %v1058 = vadd.f32 %v751, %v524
  %v1059 = vadd.f32 %v754, %v524
  %v1060 = vadd.f32 %v756, %v524
  %v1061 = vadd.f32 %v759, %v524
  %v1062 = vadd.f32 %v761, %v524
  %v1063 = vadd.f32 %v764, %v524
  %v1064 = vadd.f32 %v766, %v524
  %v1065 = vadd.f32 %v769, %v524
  %v1066 = vadd.f32 %v771, %v524
  %v1067 = vadd.f32 %v774, %v524
  %v1068 = vadd.f32 %v776, %v524
  %v1069 = vadd.f32 %v779, %v524
  %v1070 = vadd.f32 %v781, %v524
  %1071 = vset.pattern.permute.xlu0 5
  %1072 = vperm.xlu0 %1071, %v49
  %v1073 = vpop.permute.xlu0 %1072
  %1075 = vset.pattern.permute.xlu0 5
  %1076 = vperm.xlu0 %1075, %v50
  %v1077 = vpop.permute.xlu0 %1076
  %1079 = vset.pattern.permute.xlu0 5
  %1080 = vperm.xlu0 %1079, %v51
  %v1081 = vpop.permute.xlu0 %1080
  %1083 = vset.pattern.permute.xlu0 5
  %1084 = vperm.xlu0 %1083, %v52
  %v1085 = vpop.permute.xlu0 %1084
  %1087 = vset.pattern.permute.xlu0 5
  %1088 = vperm.xlu0 %1087, %v53
  %v1089 = vpop.permute.xlu0 %1088
  %1091 = vset.pattern.permute.xlu0 5
  %1092 = vperm.xlu0 %1091, %v54
  %v1093 = vpop.permute.xlu0 %1092
  %1095 = vset.pattern.permute.xlu0 5
  %1096 = vperm.xlu0 %1095, %v55
  %v1097 = vpop.permute.xlu0 %1096
  %1099 = vset.pattern.permute.xlu0 5
  %1100 = vperm.xlu0 %1099, %v56
  %v1101 = vpop.permute.xlu0 %1100
  %1103 = vset.pattern.permute.xlu0 5
  %1104 = vperm.xlu0 %1103, %v57
  %v1105 = vpop.permute.xlu0 %1104
  %1107 = vset.pattern.permute.xlu0 5
  %1108 = vperm.xlu0 %1107, %v58
  %v1109 = vpop.permute.xlu0 %1108
  %1111 = vset.pattern.permute.xlu0 5
  %1112 = vperm.xlu0 %1111, %v59
  %v1113 = vpop.permute.xlu0 %1112
  %1115 = vset.pattern.permute.xlu0 5
  %1116 = vperm.xlu0 %1115, %v60
  %v1117 = vpop.permute.xlu0 %1116
  %1119 = vset.pattern.permute.xlu0 5
  %1120 = vperm.xlu0 %1119, %v61
  %v1121 = vpop.permute.xlu0 %1120
  %1123 = vset.pattern.permute.xlu0 5
  %1124 = vperm.xlu0 %1123, %v62
  %v1125 = vpop.permute.xlu0 %1124
  %1127 = vset.pattern.permute.xlu0 5
  %1128 = vperm.xlu0 %1127, %v63
  %v1129 = vpop.permute.xlu0 %1128
  %1131 = vset.pattern.permute.xlu0 5
  %1132 = vperm.xlu0 %1131, %v64
  %v1133 = vpop.permute.xlu0 %1132
  %v1135 = vmul.f32 %v1055, %v1073
  %v1136 = vmul.f32 %v1056, %v1077
  %v1137 = vmul.f32 %v1057, %v1081
  %v1138 = vmul.f32 %v1058, %v1085
  %v1139 = vmul.f32 %v1059, %v1089
  %v1140 = vmul.f32 %v1060, %v1093
  %v1141 = vmul.f32 %v1061, %v1097
  %v1142 = vmul.f32 %v1062, %v1101
  %v1143 = vmul.f32 %v1063, %v1105
  %v1144 = vmul.f32 %v1064, %v1109
  %v1145 = vmul.f32 %v1065, %v1113
  %v1146 = vmul.f32 %v1066, %v1117
  %v1147 = vmul.f32 %v1067, %v1121
  %v1148 = vmul.f32 %v1068, %v1125
  %v1149 = vmul.f32 %v1069, %v1129
  %v1150 = vmul.f32 %v1070, %v1133
  %1167 = vrot.lane.b32.xlu0 %v1135, 64
  %v1168 = vpop.permute.xlu0 %1167
  %1169 = vrot.lane.b32.xlu0 %v1136, 64
  %v1170 = vpop.permute.xlu0 %1169
  %1171 = vrot.lane.b32.xlu0 %v1137, 64
  %v1172 = vpop.permute.xlu0 %1171
  %1173 = vrot.lane.b32.xlu0 %v1138, 64
  %v1174 = vpop.permute.xlu0 %1173
  %1175 = vrot.lane.b32.xlu0 %v1139, 64
  %v1176 = vpop.permute.xlu0 %1175
  %1177 = vrot.lane.b32.xlu0 %v1140, 64
  %v1178 = vpop.permute.xlu0 %1177
  %1179 = vrot.lane.b32.xlu0 %v1141, 64
  %v1180 = vpop.permute.xlu0 %1179
  %1181 = vrot.lane.b32.xlu0 %v1142, 64
  %v1182 = vpop.permute.xlu0 %1181
  %1183 = vrot.lane.b32.xlu0 %v1143, 64
  %v1184 = vpop.permute.xlu0 %1183
  %1185 = vrot.lane.b32.xlu0 %v1144, 64
  %v1186 = vpop.permute.xlu0 %1185
  %1187 = vrot.lane.b32.xlu0 %v1145, 64
  %v1188 = vpop.permute.xlu0 %1187
  %1189 = vrot.lane.b32.xlu0 %v1146, 64
  %v1190 = vpop.permute.xlu0 %1189
  %1191 = vrot.lane.b32.xlu0 %v1147, 64
  %v1192 = vpop.permute.xlu0 %1191
  %1193 = vrot.lane.b32.xlu0 %v1148, 64
  %v1194 = vpop.permute.xlu0 %1193
  %1195 = vrot.lane.b32.xlu0 %v1149, 64
  %v1196 = vpop.permute.xlu0 %1195
  %1197 = vrot.lane.b32.xlu0 %v1150, 64
  %v1198 = vpop.permute.xlu0 %1197
  %v1215 = vadd.f32 %v1039, %v1168
  %v1216 = vadd.f32 %v1040, %v1170
  %v1217 = vadd.f32 %v1041, %v1172
  %v1218 = vadd.f32 %v1042, %v1174
  %v1219 = vadd.f32 %v1043, %v1176
  %v1220 = vadd.f32 %v1044, %v1178
  %v1221 = vadd.f32 %v1045, %v1180
  %v1222 = vadd.f32 %v1046, %v1182
  %v1223 = vadd.f32 %v1047, %v1184
  %v1224 = vadd.f32 %v1048, %v1186
  %v1225 = vadd.f32 %v1049, %v1188
  %v1226 = vadd.f32 %v1050, %v1190
  %v1227 = vadd.f32 %v1051, %v1192
  %v1228 = vadd.f32 %v1052, %v1194
  %v1229 = vadd.f32 %v1053, %v1196
  %v1230 = vadd.f32 %v1054, %v1198
  %v1247 = vunpack.c.l.b16 %v18
  %v1248 = vunpack.c.l.b16 %v20
  %v1249 = vunpack.c.l.b16 %v22
  %v1250 = vunpack.c.l.b16 %v24
  %v1251 = vunpack.c.l.b16 %v26
  %v1252 = vunpack.c.l.b16 %v28
  %v1253 = vunpack.c.l.b16 %v30
  %v1254 = vunpack.c.l.b16 %v32
  %v1255 = vunpack.c.l.b16 %v34
  %v1256 = vunpack.c.l.b16 %v36
  %v1257 = vunpack.c.l.b16 %v38
  %v1258 = vunpack.c.l.b16 %v40
  %v1259 = vunpack.c.l.b16 %v42
  %v1260 = vunpack.c.l.b16 %v44
  %v1261 = vunpack.c.l.b16 %v46
  %v1262 = vunpack.c.l.b16 %v48
  %v1263 = vpack.c.b16 %v1248, %v1247
  %v1264 = vpack.c.b16 %v1250, %v1249
  %v1265 = vpack.c.b16 %v1252, %v1251
  %v1266 = vpack.c.b16 %v1254, %v1253
  %v1267 = vpack.c.b16 %v1256, %v1255
  %v1268 = vpack.c.b16 %v1258, %v1257
  %v1269 = vpack.c.b16 %v1260, %v1259
  %v1270 = vpack.c.b16 %v1262, %v1261
  %1279 = vmatpush.bf16.msra.mxu0 %v169
  %1280 = vmatpush.bf16.msra.mxu0 %v168
  %1281 = vmatpush.bf16.msra.mxu0 %v167
  %1282 = vmatpush.bf16.msra.mxu0 %v166
  %1283 = vmatpush.bf16.msra.mxu0 %v165
  %1284 = vmatpush.bf16.msra.mxu0 %v164
  %1285 = vmatpush.bf16.msra.mxu0 %v163
  %1286 = vmatpush.bf16.msra.mxu0 %v162
  %1287 = vmatmul.bf16.gmra.mxu0 %v1263
  %v1288 = vpop.f32.mrf.mxu0
  %v1289 = vadd.f32 0.0, %v1288
  %v1290 = vpop.f32.mrf.mxu0
  %v1291 = vadd.f32 0.0, %v1290
  %1292 = vmatmul.bf16.gmra.mxu0 %v1264
  %v1293 = vpop.f32.mrf.mxu0
  %v1294 = vadd.f32 0.0, %v1293
  %v1295 = vpop.f32.mrf.mxu0
  %v1296 = vadd.f32 0.0, %v1295
  %1297 = vmatmul.bf16.gmra.mxu0 %v1265
  %v1298 = vpop.f32.mrf.mxu0
  %v1299 = vadd.f32 0.0, %v1298
  %v1300 = vpop.f32.mrf.mxu0
  %v1301 = vadd.f32 0.0, %v1300
  %1302 = vmatmul.bf16.gmra.mxu0 %v1266
  %v1303 = vpop.f32.mrf.mxu0
  %v1304 = vadd.f32 0.0, %v1303
  %v1305 = vpop.f32.mrf.mxu0
  %v1306 = vadd.f32 0.0, %v1305
  %1307 = vmatmul.bf16.gmra.mxu0 %v1267
  %v1308 = vpop.f32.mrf.mxu0
  %v1309 = vadd.f32 0.0, %v1308
  %v1310 = vpop.f32.mrf.mxu0
  %v1311 = vadd.f32 0.0, %v1310
  %1312 = vmatmul.bf16.gmra.mxu0 %v1268
  %v1313 = vpop.f32.mrf.mxu0
  %v1314 = vadd.f32 0.0, %v1313
  %v1315 = vpop.f32.mrf.mxu0
  %v1316 = vadd.f32 0.0, %v1315
  %1317 = vmatmul.bf16.gmra.mxu0 %v1269
  %v1318 = vpop.f32.mrf.mxu0
  %v1319 = vadd.f32 0.0, %v1318
  %v1320 = vpop.f32.mrf.mxu0
  %v1321 = vadd.f32 0.0, %v1320
  %1322 = vmatmul.bf16.gmra.mxu0 %v1270
  %v1323 = vpop.f32.mrf.mxu0
  %v1324 = vadd.f32 0.0, %v1323
  %v1325 = vpop.f32.mrf.mxu0
  %v1326 = vadd.f32 0.0, %v1325
  %1327 = vdwg.mxu0
  %v1328 = vadd.f32 %v1289, %v227
  %v1329 = vadd.f32 %v1291, %v227
  %v1330 = vadd.f32 %v1294, %v227
  %v1331 = vadd.f32 %v1296, %v227
  %v1332 = vadd.f32 %v1299, %v227
  %v1333 = vadd.f32 %v1301, %v227
  %v1334 = vadd.f32 %v1304, %v227
  %v1335 = vadd.f32 %v1306, %v227
  %v1336 = vadd.f32 %v1309, %v227
  %v1337 = vadd.f32 %v1311, %v227
  %v1338 = vadd.f32 %v1314, %v227
  %v1339 = vadd.f32 %v1316, %v227
  %v1340 = vadd.f32 %v1319, %v227
  %v1341 = vadd.f32 %v1321, %v227
  %v1342 = vadd.f32 %v1324, %v227
  %v1343 = vadd.f32 %v1326, %v227
  %1344 = vset.pattern.permute.xlu0 6
  %1345 = vperm.xlu0 %1344, %v49
  %v1346 = vpop.permute.xlu0 %1345
  %1348 = vset.pattern.permute.xlu0 6
  %1349 = vperm.xlu0 %1348, %v50
  %v1350 = vpop.permute.xlu0 %1349
  %1352 = vset.pattern.permute.xlu0 6
  %1353 = vperm.xlu0 %1352, %v51
  %v1354 = vpop.permute.xlu0 %1353
  %1356 = vset.pattern.permute.xlu0 6
  %1357 = vperm.xlu0 %1356, %v52
  %v1358 = vpop.permute.xlu0 %1357
  %1360 = vset.pattern.permute.xlu0 6
  %1361 = vperm.xlu0 %1360, %v53
  %v1362 = vpop.permute.xlu0 %1361
  %1364 = vset.pattern.permute.xlu0 6
  %1365 = vperm.xlu0 %1364, %v54
  %v1366 = vpop.permute.xlu0 %1365
  %1368 = vset.pattern.permute.xlu0 6
  %1369 = vperm.xlu0 %1368, %v55
  %v1370 = vpop.permute.xlu0 %1369
  %1372 = vset.pattern.permute.xlu0 6
  %1373 = vperm.xlu0 %1372, %v56
  %v1374 = vpop.permute.xlu0 %1373
  %1376 = vset.pattern.permute.xlu0 6
  %1377 = vperm.xlu0 %1376, %v57
  %v1378 = vpop.permute.xlu0 %1377
  %1380 = vset.pattern.permute.xlu0 6
  %1381 = vperm.xlu0 %1380, %v58
  %v1382 = vpop.permute.xlu0 %1381
  %1384 = vset.pattern.permute.xlu0 6
  %1385 = vperm.xlu0 %1384, %v59
  %v1386 = vpop.permute.xlu0 %1385
  %1388 = vset.pattern.permute.xlu0 6
  %1389 = vperm.xlu0 %1388, %v60
  %v1390 = vpop.permute.xlu0 %1389
  %1392 = vset.pattern.permute.xlu0 6
  %1393 = vperm.xlu0 %1392, %v61
  %v1394 = vpop.permute.xlu0 %1393
  %1396 = vset.pattern.permute.xlu0 6
  %1397 = vperm.xlu0 %1396, %v62
  %v1398 = vpop.permute.xlu0 %1397
  %1400 = vset.pattern.permute.xlu0 6
  %1401 = vperm.xlu0 %1400, %v63
  %v1402 = vpop.permute.xlu0 %1401
  %1404 = vset.pattern.permute.xlu0 6
  %1405 = vperm.xlu0 %1404, %v64
  %v1406 = vpop.permute.xlu0 %1405
  %v1408 = vmul.f32 %v1328, %v1346
  %v1409 = vmul.f32 %v1329, %v1350
  %v1410 = vmul.f32 %v1330, %v1354
  %v1411 = vmul.f32 %v1331, %v1358
  %v1412 = vmul.f32 %v1332, %v1362
  %v1413 = vmul.f32 %v1333, %v1366
  %v1414 = vmul.f32 %v1334, %v1370
  %v1415 = vmul.f32 %v1335, %v1374
  %v1416 = vmul.f32 %v1336, %v1378
  %v1417 = vmul.f32 %v1337, %v1382
  %v1418 = vmul.f32 %v1338, %v1386
  %v1419 = vmul.f32 %v1339, %v1390
  %v1420 = vmul.f32 %v1340, %v1394
  %v1421 = vmul.f32 %v1341, %v1398
  %v1422 = vmul.f32 %v1342, %v1402
  %v1423 = vmul.f32 %v1343, %v1406
  %v1424 = vadd.f32 %v1289, %v343
  %v1425 = vadd.f32 %v1291, %v343
  %v1426 = vadd.f32 %v1294, %v343
  %v1427 = vadd.f32 %v1296, %v343
  %v1428 = vadd.f32 %v1299, %v343
  %v1429 = vadd.f32 %v1301, %v343
  %v1430 = vadd.f32 %v1304, %v343
  %v1431 = vadd.f32 %v1306, %v343
  %v1432 = vadd.f32 %v1309, %v343
  %v1433 = vadd.f32 %v1311, %v343
  %v1434 = vadd.f32 %v1314, %v343
  %v1435 = vadd.f32 %v1316, %v343
  %v1436 = vadd.f32 %v1319, %v343
  %v1437 = vadd.f32 %v1321, %v343
  %v1438 = vadd.f32 %v1324, %v343
  %v1439 = vadd.f32 %v1326, %v343
  %1440 = vset.pattern.permute.xlu0 7
  %1441 = vperm.xlu0 %1440, %v49
  %v1442 = vpop.permute.xlu0 %1441
  %1444 = vset.pattern.permute.xlu0 7
  %1445 = vperm.xlu0 %1444, %v50
  %v1446 = vpop.permute.xlu0 %1445
  %1448 = vset.pattern.permute.xlu0 7
  %1449 = vperm.xlu0 %1448, %v51
  %v1450 = vpop.permute.xlu0 %1449
  %1452 = vset.pattern.permute.xlu0 7
  %1453 = vperm.xlu0 %1452, %v52
  %v1454 = vpop.permute.xlu0 %1453
  %1456 = vset.pattern.permute.xlu0 7
  %1457 = vperm.xlu0 %1456, %v53
  %v1458 = vpop.permute.xlu0 %1457
  %1460 = vset.pattern.permute.xlu0 7
  %1461 = vperm.xlu0 %1460, %v54
  %v1462 = vpop.permute.xlu0 %1461
  %1464 = vset.pattern.permute.xlu0 7
  %1465 = vperm.xlu0 %1464, %v55
  %v1466 = vpop.permute.xlu0 %1465
  %1468 = vset.pattern.permute.xlu0 7
  %1469 = vperm.xlu0 %1468, %v56
  %v1470 = vpop.permute.xlu0 %1469
  %1472 = vset.pattern.permute.xlu0 7
  %1473 = vperm.xlu0 %1472, %v57
  %v1474 = vpop.permute.xlu0 %1473
  %1476 = vset.pattern.permute.xlu0 7
  %1477 = vperm.xlu0 %1476, %v58
  %v1478 = vpop.permute.xlu0 %1477
  %1480 = vset.pattern.permute.xlu0 7
  %1481 = vperm.xlu0 %1480, %v59
  %v1482 = vpop.permute.xlu0 %1481
  %1484 = vset.pattern.permute.xlu0 7
  %1485 = vperm.xlu0 %1484, %v60
  %v1486 = vpop.permute.xlu0 %1485
  %1488 = vset.pattern.permute.xlu0 7
  %1489 = vperm.xlu0 %1488, %v61
  %v1490 = vpop.permute.xlu0 %1489
  %1492 = vset.pattern.permute.xlu0 7
  %1493 = vperm.xlu0 %1492, %v62
  %v1494 = vpop.permute.xlu0 %1493
  %1496 = vset.pattern.permute.xlu0 7
  %1497 = vperm.xlu0 %1496, %v63
  %v1498 = vpop.permute.xlu0 %1497
  %1500 = vset.pattern.permute.xlu0 7
  %1501 = vperm.xlu0 %1500, %v64
  %v1502 = vpop.permute.xlu0 %1501
  %v1504 = vmul.f32 %v1424, %v1442
  %v1505 = vmul.f32 %v1425, %v1446
  %v1506 = vmul.f32 %v1426, %v1450
  %v1507 = vmul.f32 %v1427, %v1454
  %v1508 = vmul.f32 %v1428, %v1458
  %v1509 = vmul.f32 %v1429, %v1462
  %v1510 = vmul.f32 %v1430, %v1466
  %v1511 = vmul.f32 %v1431, %v1470
  %v1512 = vmul.f32 %v1432, %v1474
  %v1513 = vmul.f32 %v1433, %v1478
  %v1514 = vmul.f32 %v1434, %v1482
  %v1515 = vmul.f32 %v1435, %v1486
  %v1516 = vmul.f32 %v1436, %v1490
  %v1517 = vmul.f32 %v1437, %v1494
  %v1518 = vmul.f32 %v1438, %v1498
  %v1519 = vmul.f32 %v1439, %v1502
  %1536 = vrot.lane.b32.xlu0 %v1504, 96
  %v1537 = vpop.permute.xlu0 %1536
  %1538 = vrot.lane.b32.xlu0 %v1505, 96
  %v1539 = vpop.permute.xlu0 %1538
  %1540 = vrot.lane.b32.xlu0 %v1506, 96
  %v1541 = vpop.permute.xlu0 %1540
  %1542 = vrot.lane.b32.xlu0 %v1507, 96
  %v1543 = vpop.permute.xlu0 %1542
  %1544 = vrot.lane.b32.xlu0 %v1508, 96
  %v1545 = vpop.permute.xlu0 %1544
  %1546 = vrot.lane.b32.xlu0 %v1509, 96
  %v1547 = vpop.permute.xlu0 %1546
  %1548 = vrot.lane.b32.xlu0 %v1510, 96
  %v1549 = vpop.permute.xlu0 %1548
  %1550 = vrot.lane.b32.xlu0 %v1511, 96
  %v1551 = vpop.permute.xlu0 %1550
  %1552 = vrot.lane.b32.xlu0 %v1512, 96
  %v1553 = vpop.permute.xlu0 %1552
  %1554 = vrot.lane.b32.xlu0 %v1513, 96
  %v1555 = vpop.permute.xlu0 %1554
  %1556 = vrot.lane.b32.xlu0 %v1514, 96
  %v1557 = vpop.permute.xlu0 %1556
  %1558 = vrot.lane.b32.xlu0 %v1515, 96
  %v1559 = vpop.permute.xlu0 %1558
  %1560 = vrot.lane.b32.xlu0 %v1516, 96
  %v1561 = vpop.permute.xlu0 %1560
  %1562 = vrot.lane.b32.xlu0 %v1517, 96
  %v1563 = vpop.permute.xlu0 %1562
  %1564 = vrot.lane.b32.xlu0 %v1518, 96
  %v1565 = vpop.permute.xlu0 %1564
  %1566 = vrot.lane.b32.xlu0 %v1519, 96
  %v1567 = vpop.permute.xlu0 %1566
  %v1584 = vadd.f32 %v1408, %v1537
  %v1585 = vadd.f32 %v1409, %v1539
  %v1586 = vadd.f32 %v1410, %v1541
  %v1587 = vadd.f32 %v1411, %v1543
  %v1588 = vadd.f32 %v1412, %v1545
  %v1589 = vadd.f32 %v1413, %v1547
  %v1590 = vadd.f32 %v1414, %v1549
  %v1591 = vadd.f32 %v1415, %v1551
  %v1592 = vadd.f32 %v1416, %v1553
  %v1593 = vadd.f32 %v1417, %v1555
  %v1594 = vadd.f32 %v1418, %v1557
  %v1595 = vadd.f32 %v1419, %v1559
  %v1596 = vadd.f32 %v1420, %v1561
  %v1597 = vadd.f32 %v1421, %v1563
  %v1598 = vadd.f32 %v1422, %v1565
  %v1599 = vadd.f32 %v1423, %v1567
  %v1600 = vadd.f32 %v1289, %v524
  %v1601 = vadd.f32 %v1291, %v524
  %v1602 = vadd.f32 %v1294, %v524
  %v1603 = vadd.f32 %v1296, %v524
  %v1604 = vadd.f32 %v1299, %v524
  %v1605 = vadd.f32 %v1301, %v524
  %v1606 = vadd.f32 %v1304, %v524
  %v1607 = vadd.f32 %v1306, %v524
  %v1608 = vadd.f32 %v1309, %v524
  %v1609 = vadd.f32 %v1311, %v524
  %v1610 = vadd.f32 %v1314, %v524
  %v1611 = vadd.f32 %v1316, %v524
  %v1612 = vadd.f32 %v1319, %v524
  %v1613 = vadd.f32 %v1321, %v524
  %v1614 = vadd.f32 %v1324, %v524
  %v1615 = vadd.f32 %v1326, %v524
  %1616 = vset.pattern.permute.xlu0 8
  %1617 = vperm.xlu0 %1616, %v49
  %v1618 = vpop.permute.xlu0 %1617
  %1620 = vset.pattern.permute.xlu0 8
  %1621 = vperm.xlu0 %1620, %v50
  %v1622 = vpop.permute.xlu0 %1621
  %1624 = vset.pattern.permute.xlu0 8
  %1625 = vperm.xlu0 %1624, %v51
  %v1626 = vpop.permute.xlu0 %1625
  %1628 = vset.pattern.permute.xlu0 8
  %1629 = vperm.xlu0 %1628, %v52
  %v1630 = vpop.permute.xlu0 %1629
  %1632 = vset.pattern.permute.xlu0 8
  %1633 = vperm.xlu0 %1632, %v53
  %v1634 = vpop.permute.xlu0 %1633
  %1636 = vset.pattern.permute.xlu0 8
  %1637 = vperm.xlu0 %1636, %v54
  %v1638 = vpop.permute.xlu0 %1637
  %1640 = vset.pattern.permute.xlu0 8
  %1641 = vperm.xlu0 %1640, %v55
  %v1642 = vpop.permute.xlu0 %1641
  %1644 = vset.pattern.permute.xlu0 8
  %1645 = vperm.xlu0 %1644, %v56
  %v1646 = vpop.permute.xlu0 %1645
  %1648 = vset.pattern.permute.xlu0 8
  %1649 = vperm.xlu0 %1648, %v57
  %v1650 = vpop.permute.xlu0 %1649
  %1652 = vset.pattern.permute.xlu0 8
  %1653 = vperm.xlu0 %1652, %v58
  %v1654 = vpop.permute.xlu0 %1653
  %1656 = vset.pattern.permute.xlu0 8
  %1657 = vperm.xlu0 %1656, %v59
  %v1658 = vpop.permute.xlu0 %1657
  %1660 = vset.pattern.permute.xlu0 8
  %1661 = vperm.xlu0 %1660, %v60
  %v1662 = vpop.permute.xlu0 %1661
  %1664 = vset.pattern.permute.xlu0 8
  %1665 = vperm.xlu0 %1664, %v61
  %v1666 = vpop.permute.xlu0 %1665
  %1668 = vset.pattern.permute.xlu0 8
  %1669 = vperm.xlu0 %1668, %v62
  %v1670 = vpop.permute.xlu0 %1669
  %1672 = vset.pattern.permute.xlu0 8
  %1673 = vperm.xlu0 %1672, %v63
  %v1674 = vpop.permute.xlu0 %1673
  %1676 = vset.pattern.permute.xlu0 8
  %1677 = vperm.xlu0 %1676, %v64
  %v1678 = vpop.permute.xlu0 %1677
  %v1680 = vmul.f32 %v1600, %v1618
  %v1681 = vmul.f32 %v1601, %v1622
  %v1682 = vmul.f32 %v1602, %v1626
  %v1683 = vmul.f32 %v1603, %v1630
  %v1684 = vmul.f32 %v1604, %v1634
  %v1685 = vmul.f32 %v1605, %v1638
  %v1686 = vmul.f32 %v1606, %v1642
  %v1687 = vmul.f32 %v1607, %v1646
  %v1688 = vmul.f32 %v1608, %v1650
  %v1689 = vmul.f32 %v1609, %v1654
  %v1690 = vmul.f32 %v1610, %v1658
  %v1691 = vmul.f32 %v1611, %v1662
  %v1692 = vmul.f32 %v1612, %v1666
  %v1693 = vmul.f32 %v1613, %v1670
  %v1694 = vmul.f32 %v1614, %v1674
  %v1695 = vmul.f32 %v1615, %v1678
  %1712 = vrot.lane.b32.xlu0 %v1680, 64
  %v1713 = vpop.permute.xlu0 %1712
  %1714 = vrot.lane.b32.xlu0 %v1681, 64
  %v1715 = vpop.permute.xlu0 %1714
  %1716 = vrot.lane.b32.xlu0 %v1682, 64
  %v1717 = vpop.permute.xlu0 %1716
  %1718 = vrot.lane.b32.xlu0 %v1683, 64
  %v1719 = vpop.permute.xlu0 %1718
  %1720 = vrot.lane.b32.xlu0 %v1684, 64
  %v1721 = vpop.permute.xlu0 %1720
  %1722 = vrot.lane.b32.xlu0 %v1685, 64
  %v1723 = vpop.permute.xlu0 %1722
  %1724 = vrot.lane.b32.xlu0 %v1686, 64
  %v1725 = vpop.permute.xlu0 %1724
  %1726 = vrot.lane.b32.xlu0 %v1687, 64
  %v1727 = vpop.permute.xlu0 %1726
  %1728 = vrot.lane.b32.xlu0 %v1688, 64
  %v1729 = vpop.permute.xlu0 %1728
  %1730 = vrot.lane.b32.xlu0 %v1689, 64
  %v1731 = vpop.permute.xlu0 %1730
  %1732 = vrot.lane.b32.xlu0 %v1690, 64
  %v1733 = vpop.permute.xlu0 %1732
  %1734 = vrot.lane.b32.xlu0 %v1691, 64
  %v1735 = vpop.permute.xlu0 %1734
  %1736 = vrot.lane.b32.xlu0 %v1692, 64
  %v1737 = vpop.permute.xlu0 %1736
  %1738 = vrot.lane.b32.xlu0 %v1693, 64
  %v1739 = vpop.permute.xlu0 %1738
  %1740 = vrot.lane.b32.xlu0 %v1694, 64
  %v1741 = vpop.permute.xlu0 %1740
  %1742 = vrot.lane.b32.xlu0 %v1695, 64
  %v1743 = vpop.permute.xlu0 %1742
  %v1760 = vadd.f32 %v1584, %v1713
  %v1761 = vadd.f32 %v1585, %v1715
  %v1762 = vadd.f32 %v1586, %v1717
  %v1763 = vadd.f32 %v1587, %v1719
  %v1764 = vadd.f32 %v1588, %v1721
  %v1765 = vadd.f32 %v1589, %v1723
  %v1766 = vadd.f32 %v1590, %v1725
  %v1767 = vadd.f32 %v1591, %v1727
  %v1768 = vadd.f32 %v1592, %v1729
  %v1769 = vadd.f32 %v1593, %v1731
  %v1770 = vadd.f32 %v1594, %v1733
  %v1771 = vadd.f32 %v1595, %v1735
  %v1772 = vadd.f32 %v1596, %v1737
  %v1773 = vadd.f32 %v1597, %v1739
  %v1774 = vadd.f32 %v1598, %v1741
  %v1775 = vadd.f32 %v1599, %v1743
  %v1776 = vunpack.c.h.b16 %v18
  %v1777 = vunpack.c.h.b16 %v20
  %v1778 = vunpack.c.h.b16 %v22
  %v1779 = vunpack.c.h.b16 %v24
  %v1780 = vunpack.c.h.b16 %v26
  %v1781 = vunpack.c.h.b16 %v28
  %v1782 = vunpack.c.h.b16 %v30
  %v1783 = vunpack.c.h.b16 %v32
  %v1784 = vunpack.c.h.b16 %v34
  %v1785 = vunpack.c.h.b16 %v36
  %v1786 = vunpack.c.h.b16 %v38
  %v1787 = vunpack.c.h.b16 %v40
  %v1788 = vunpack.c.h.b16 %v42
  %v1789 = vunpack.c.h.b16 %v44
  %v1790 = vunpack.c.h.b16 %v46
  %v1791 = vunpack.c.h.b16 %v48
  %v1792 = vpack.c.b16 %v1777, %v1776
  %v1793 = vpack.c.b16 %v1779, %v1778
  %v1794 = vpack.c.b16 %v1781, %v1780
  %v1795 = vpack.c.b16 %v1783, %v1782
  %v1796 = vpack.c.b16 %v1785, %v1784
  %v1797 = vpack.c.b16 %v1787, %v1786
  %v1798 = vpack.c.b16 %v1789, %v1788
  %v1799 = vpack.c.b16 %v1791, %v1790
  %1808 = vmatpush.bf16.msra.mxu0 %v169
  %1809 = vmatpush.bf16.msra.mxu0 %v168
  %1810 = vmatpush.bf16.msra.mxu0 %v167
  %1811 = vmatpush.bf16.msra.mxu0 %v166
  %1812 = vmatpush.bf16.msra.mxu0 %v165
  %1813 = vmatpush.bf16.msra.mxu0 %v164
  %1814 = vmatpush.bf16.msra.mxu0 %v163
  %1815 = vmatpush.bf16.msra.mxu0 %v162
  %1816 = vmatmul.bf16.gmra.mxu0 %v1792
  %v1817 = vpop.f32.mrf.mxu0
  %v1818 = vadd.f32 0.0, %v1817
  %v1819 = vpop.f32.mrf.mxu0
  %v1820 = vadd.f32 0.0, %v1819
  %1821 = vmatmul.bf16.gmra.mxu0 %v1793
  %v1822 = vpop.f32.mrf.mxu0
  %v1823 = vadd.f32 0.0, %v1822
  %v1824 = vpop.f32.mrf.mxu0
  %v1825 = vadd.f32 0.0, %v1824
  %1826 = vmatmul.bf16.gmra.mxu0 %v1794
  %v1827 = vpop.f32.mrf.mxu0
  %v1828 = vadd.f32 0.0, %v1827
  %v1829 = vpop.f32.mrf.mxu0
  %v1830 = vadd.f32 0.0, %v1829
  %1831 = vmatmul.bf16.gmra.mxu0 %v1795
  %v1832 = vpop.f32.mrf.mxu0
  %v1833 = vadd.f32 0.0, %v1832
  %v1834 = vpop.f32.mrf.mxu0
  %v1835 = vadd.f32 0.0, %v1834
  %1836 = vmatmul.bf16.gmra.mxu0 %v1796
  %v1837 = vpop.f32.mrf.mxu0
  %v1838 = vadd.f32 0.0, %v1837
  %v1839 = vpop.f32.mrf.mxu0
  %v1840 = vadd.f32 0.0, %v1839
  %1841 = vmatmul.bf16.gmra.mxu0 %v1797
  %v1842 = vpop.f32.mrf.mxu0
  %v1843 = vadd.f32 0.0, %v1842
  %v1844 = vpop.f32.mrf.mxu0
  %v1845 = vadd.f32 0.0, %v1844
  %1846 = vmatmul.bf16.gmra.mxu0 %v1798
  %v1847 = vpop.f32.mrf.mxu0
  %v1848 = vadd.f32 0.0, %v1847
  %v1849 = vpop.f32.mrf.mxu0
  %v1850 = vadd.f32 0.0, %v1849
  %1851 = vmatmul.bf16.gmra.mxu0 %v1799
  %v1852 = vpop.f32.mrf.mxu0
  %v1853 = vadd.f32 0.0, %v1852
  %v1854 = vpop.f32.mrf.mxu0
  %v1855 = vadd.f32 0.0, %v1854
  %1856 = vdwg.mxu0
  %v1857 = vadd.f32 %v1818, %v227
  %v1858 = vadd.f32 %v1820, %v227
  %v1859 = vadd.f32 %v1823, %v227
  %v1860 = vadd.f32 %v1825, %v227
  %v1861 = vadd.f32 %v1828, %v227
  %v1862 = vadd.f32 %v1830, %v227
  %v1863 = vadd.f32 %v1833, %v227
  %v1864 = vadd.f32 %v1835, %v227
  %v1865 = vadd.f32 %v1838, %v227
  %v1866 = vadd.f32 %v1840, %v227
  %v1867 = vadd.f32 %v1843, %v227
  %v1868 = vadd.f32 %v1845, %v227
  %v1869 = vadd.f32 %v1848, %v227
  %v1870 = vadd.f32 %v1850, %v227
  %v1871 = vadd.f32 %v1853, %v227
  %v1872 = vadd.f32 %v1855, %v227
  %1873 = vset.pattern.permute.xlu0 9
  %1874 = vperm.xlu0 %1873, %v49
  %v1875 = vpop.permute.xlu0 %1874
  %1877 = vset.pattern.permute.xlu0 9
  %1878 = vperm.xlu0 %1877, %v50
  %v1879 = vpop.permute.xlu0 %1878
  %1881 = vset.pattern.permute.xlu0 9
  %1882 = vperm.xlu0 %1881, %v51
  %v1883 = vpop.permute.xlu0 %1882
  %1885 = vset.pattern.permute.xlu0 9
  %1886 = vperm.xlu0 %1885, %v52
  %v1887 = vpop.permute.xlu0 %1886
  %1889 = vset.pattern.permute.xlu0 9
  %1890 = vperm.xlu0 %1889, %v53
  %v1891 = vpop.permute.xlu0 %1890
  %1893 = vset.pattern.permute.xlu0 9
  %1894 = vperm.xlu0 %1893, %v54
  %v1895 = vpop.permute.xlu0 %1894
  %1897 = vset.pattern.permute.xlu0 9
  %1898 = vperm.xlu0 %1897, %v55
  %v1899 = vpop.permute.xlu0 %1898
  %1901 = vset.pattern.permute.xlu0 9
  %1902 = vperm.xlu0 %1901, %v56
  %v1903 = vpop.permute.xlu0 %1902
  %1905 = vset.pattern.permute.xlu0 9
  %1906 = vperm.xlu0 %1905, %v57
  %v1907 = vpop.permute.xlu0 %1906
  %1909 = vset.pattern.permute.xlu0 9
  %1910 = vperm.xlu0 %1909, %v58
  %v1911 = vpop.permute.xlu0 %1910
  %1913 = vset.pattern.permute.xlu0 9
  %1914 = vperm.xlu0 %1913, %v59
  %v1915 = vpop.permute.xlu0 %1914
  %1917 = vset.pattern.permute.xlu0 9
  %1918 = vperm.xlu0 %1917, %v60
  %v1919 = vpop.permute.xlu0 %1918
  %1921 = vset.pattern.permute.xlu0 9
  %1922 = vperm.xlu0 %1921, %v61
  %v1923 = vpop.permute.xlu0 %1922
  %1925 = vset.pattern.permute.xlu0 9
  %1926 = vperm.xlu0 %1925, %v62
  %v1927 = vpop.permute.xlu0 %1926
  %1929 = vset.pattern.permute.xlu0 9
  %1930 = vperm.xlu0 %1929, %v63
  %v1931 = vpop.permute.xlu0 %1930
  %1933 = vset.pattern.permute.xlu0 9
  %1934 = vperm.xlu0 %1933, %v64
  %v1935 = vpop.permute.xlu0 %1934
  %v1937 = vmul.f32 %v1857, %v1875
  %v1938 = vmul.f32 %v1858, %v1879
  %v1939 = vmul.f32 %v1859, %v1883
  %v1940 = vmul.f32 %v1860, %v1887
  %v1941 = vmul.f32 %v1861, %v1891
  %v1942 = vmul.f32 %v1862, %v1895
  %v1943 = vmul.f32 %v1863, %v1899
  %v1944 = vmul.f32 %v1864, %v1903
  %v1945 = vmul.f32 %v1865, %v1907
  %v1946 = vmul.f32 %v1866, %v1911
  %v1947 = vmul.f32 %v1867, %v1915
  %v1948 = vmul.f32 %v1868, %v1919
  %v1949 = vmul.f32 %v1869, %v1923
  %v1950 = vmul.f32 %v1870, %v1927
  %v1951 = vmul.f32 %v1871, %v1931
  %v1952 = vmul.f32 %v1872, %v1935
  %v1953 = vadd.f32 %v1818, %v343
  %v1954 = vadd.f32 %v1820, %v343
  %v1955 = vadd.f32 %v1823, %v343
  %v1956 = vadd.f32 %v1825, %v343
  %v1957 = vadd.f32 %v1828, %v343
  %v1958 = vadd.f32 %v1830, %v343
  %v1959 = vadd.f32 %v1833, %v343
  %v1960 = vadd.f32 %v1835, %v343
  %v1961 = vadd.f32 %v1838, %v343
  %v1962 = vadd.f32 %v1840, %v343
  %v1963 = vadd.f32 %v1843, %v343
  %v1964 = vadd.f32 %v1845, %v343
  %v1965 = vadd.f32 %v1848, %v343
  %v1966 = vadd.f32 %v1850, %v343
  %v1967 = vadd.f32 %v1853, %v343
  %v1968 = vadd.f32 %v1855, %v343
  %1969 = vset.pattern.permute.xlu0 10
  %1970 = vperm.xlu0 %1969, %v49
  %v1971 = vpop.permute.xlu0 %1970
  %1973 = vset.pattern.permute.xlu0 10
  %1974 = vperm.xlu0 %1973, %v50
  %v1975 = vpop.permute.xlu0 %1974
  %1977 = vset.pattern.permute.xlu0 10
  %1978 = vperm.xlu0 %1977, %v51
  %v1979 = vpop.permute.xlu0 %1978
  %1981 = vset.pattern.permute.xlu0 10
  %1982 = vperm.xlu0 %1981, %v52
  %v1983 = vpop.permute.xlu0 %1982
  %1985 = vset.pattern.permute.xlu0 10
  %1986 = vperm.xlu0 %1985, %v53
  %v1987 = vpop.permute.xlu0 %1986
  %1989 = vset.pattern.permute.xlu0 10
  %1990 = vperm.xlu0 %1989, %v54
  %v1991 = vpop.permute.xlu0 %1990
  %1993 = vset.pattern.permute.xlu0 10
  %1994 = vperm.xlu0 %1993, %v55
  %v1995 = vpop.permute.xlu0 %1994
  %1997 = vset.pattern.permute.xlu0 10
  %1998 = vperm.xlu0 %1997, %v56
  %v1999 = vpop.permute.xlu0 %1998
  %2001 = vset.pattern.permute.xlu0 10
  %2002 = vperm.xlu0 %2001, %v57
  %v2003 = vpop.permute.xlu0 %2002
  %2005 = vset.pattern.permute.xlu0 10
  %2006 = vperm.xlu0 %2005, %v58
  %v2007 = vpop.permute.xlu0 %2006
  %2009 = vset.pattern.permute.xlu0 10
  %2010 = vperm.xlu0 %2009, %v59
  %v2011 = vpop.permute.xlu0 %2010
  %2013 = vset.pattern.permute.xlu0 10
  %2014 = vperm.xlu0 %2013, %v60
  %v2015 = vpop.permute.xlu0 %2014
  %2017 = vset.pattern.permute.xlu0 10
  %2018 = vperm.xlu0 %2017, %v61
  %v2019 = vpop.permute.xlu0 %2018
  %2021 = vset.pattern.permute.xlu0 10
  %2022 = vperm.xlu0 %2021, %v62
  %v2023 = vpop.permute.xlu0 %2022
  %2025 = vset.pattern.permute.xlu0 10
  %2026 = vperm.xlu0 %2025, %v63
  %v2027 = vpop.permute.xlu0 %2026
  %2029 = vset.pattern.permute.xlu0 10
  %2030 = vperm.xlu0 %2029, %v64
  %v2031 = vpop.permute.xlu0 %2030
  %v2033 = vmul.f32 %v1953, %v1971
  %v2034 = vmul.f32 %v1954, %v1975
  %v2035 = vmul.f32 %v1955, %v1979
  %v2036 = vmul.f32 %v1956, %v1983
  %v2037 = vmul.f32 %v1957, %v1987
  %v2038 = vmul.f32 %v1958, %v1991
  %v2039 = vmul.f32 %v1959, %v1995
  %v2040 = vmul.f32 %v1960, %v1999
  %v2041 = vmul.f32 %v1961, %v2003
  %v2042 = vmul.f32 %v1962, %v2007
  %v2043 = vmul.f32 %v1963, %v2011
  %v2044 = vmul.f32 %v1964, %v2015
  %v2045 = vmul.f32 %v1965, %v2019
  %v2046 = vmul.f32 %v1966, %v2023
  %v2047 = vmul.f32 %v1967, %v2027
  %v2048 = vmul.f32 %v1968, %v2031
  %2065 = vrot.lane.b32.xlu0 %v2033, 96
  %v2066 = vpop.permute.xlu0 %2065
  %2067 = vrot.lane.b32.xlu0 %v2034, 96
  %v2068 = vpop.permute.xlu0 %2067
  %2069 = vrot.lane.b32.xlu0 %v2035, 96
  %v2070 = vpop.permute.xlu0 %2069
  %2071 = vrot.lane.b32.xlu0 %v2036, 96
  %v2072 = vpop.permute.xlu0 %2071
  %2073 = vrot.lane.b32.xlu0 %v2037, 96
  %v2074 = vpop.permute.xlu0 %2073
  %2075 = vrot.lane.b32.xlu0 %v2038, 96
  %v2076 = vpop.permute.xlu0 %2075
  %2077 = vrot.lane.b32.xlu0 %v2039, 96
  %v2078 = vpop.permute.xlu0 %2077
  %2079 = vrot.lane.b32.xlu0 %v2040, 96
  %v2080 = vpop.permute.xlu0 %2079
  %2081 = vrot.lane.b32.xlu0 %v2041, 96
  %v2082 = vpop.permute.xlu0 %2081
  %2083 = vrot.lane.b32.xlu0 %v2042, 96
  %v2084 = vpop.permute.xlu0 %2083
  %2085 = vrot.lane.b32.xlu0 %v2043, 96
  %v2086 = vpop.permute.xlu0 %2085
  %2087 = vrot.lane.b32.xlu0 %v2044, 96
  %v2088 = vpop.permute.xlu0 %2087
  %2089 = vrot.lane.b32.xlu0 %v2045, 96
  %v2090 = vpop.permute.xlu0 %2089
  %2091 = vrot.lane.b32.xlu0 %v2046, 96
  %v2092 = vpop.permute.xlu0 %2091
  %2093 = vrot.lane.b32.xlu0 %v2047, 96
  %v2094 = vpop.permute.xlu0 %2093
  %2095 = vrot.lane.b32.xlu0 %v2048, 96
  %v2096 = vpop.permute.xlu0 %2095
  %v2113 = vadd.f32 %v1937, %v2066
  %v2114 = vadd.f32 %v1938, %v2068
  %v2115 = vadd.f32 %v1939, %v2070
  %v2116 = vadd.f32 %v1940, %v2072
  %v2117 = vadd.f32 %v1941, %v2074
  %v2118 = vadd.f32 %v1942, %v2076
  %v2119 = vadd.f32 %v1943, %v2078
  %v2120 = vadd.f32 %v1944, %v2080
  %v2121 = vadd.f32 %v1945, %v2082
  %v2122 = vadd.f32 %v1946, %v2084
  %v2123 = vadd.f32 %v1947, %v2086
  %v2124 = vadd.f32 %v1948, %v2088
  %v2125 = vadd.f32 %v1949, %v2090
  %v2126 = vadd.f32 %v1950, %v2092
  %v2127 = vadd.f32 %v1951, %v2094
  %v2128 = vadd.f32 %v1952, %v2096
  %v2129 = vadd.f32 %v1818, %v524
  %v2130 = vadd.f32 %v1820, %v524
  %v2131 = vadd.f32 %v1823, %v524
  %v2132 = vadd.f32 %v1825, %v524
  %v2133 = vadd.f32 %v1828, %v524
  %v2134 = vadd.f32 %v1830, %v524
  %v2135 = vadd.f32 %v1833, %v524
  %v2136 = vadd.f32 %v1835, %v524
  %v2137 = vadd.f32 %v1838, %v524
  %v2138 = vadd.f32 %v1840, %v524
  %v2139 = vadd.f32 %v1843, %v524
  %v2140 = vadd.f32 %v1845, %v524
  %v2141 = vadd.f32 %v1848, %v524
  %v2142 = vadd.f32 %v1850, %v524
  %v2143 = vadd.f32 %v1853, %v524
  %v2144 = vadd.f32 %v1855, %v524
  %2145 = vset.pattern.permute.xlu0 11
  %2146 = vperm.xlu0 %2145, %v49
  %v2147 = vpop.permute.xlu0 %2146
  %2149 = vset.pattern.permute.xlu0 11
  %2150 = vperm.xlu0 %2149, %v50
  %v2151 = vpop.permute.xlu0 %2150
  %2153 = vset.pattern.permute.xlu0 11
  %2154 = vperm.xlu0 %2153, %v51
  %v2155 = vpop.permute.xlu0 %2154
  %2157 = vset.pattern.permute.xlu0 11
  %2158 = vperm.xlu0 %2157, %v52
  %v2159 = vpop.permute.xlu0 %2158
  %2161 = vset.pattern.permute.xlu0 11
  %2162 = vperm.xlu0 %2161, %v53
  %v2163 = vpop.permute.xlu0 %2162
  %2165 = vset.pattern.permute.xlu0 11
  %2166 = vperm.xlu0 %2165, %v54
  %v2167 = vpop.permute.xlu0 %2166
  %2169 = vset.pattern.permute.xlu0 11
  %2170 = vperm.xlu0 %2169, %v55
  %v2171 = vpop.permute.xlu0 %2170
  %2173 = vset.pattern.permute.xlu0 11
  %2174 = vperm.xlu0 %2173, %v56
  %v2175 = vpop.permute.xlu0 %2174
  %2177 = vset.pattern.permute.xlu0 11
  %2178 = vperm.xlu0 %2177, %v57
  %v2179 = vpop.permute.xlu0 %2178
  %2181 = vset.pattern.permute.xlu0 11
  %2182 = vperm.xlu0 %2181, %v58
  %v2183 = vpop.permute.xlu0 %2182
  %2185 = vset.pattern.permute.xlu0 11
  %2186 = vperm.xlu0 %2185, %v59
  %v2187 = vpop.permute.xlu0 %2186
  %2189 = vset.pattern.permute.xlu0 11
  %2190 = vperm.xlu0 %2189, %v60
  %v2191 = vpop.permute.xlu0 %2190
  %2193 = vset.pattern.permute.xlu0 11
  %2194 = vperm.xlu0 %2193, %v61
  %v2195 = vpop.permute.xlu0 %2194
  %2197 = vset.pattern.permute.xlu0 11
  %2198 = vperm.xlu0 %2197, %v62
  %v2199 = vpop.permute.xlu0 %2198
  %2201 = vset.pattern.permute.xlu0 11
  %2202 = vperm.xlu0 %2201, %v63
  %v2203 = vpop.permute.xlu0 %2202
  %2205 = vset.pattern.permute.xlu0 11
  %2206 = vperm.xlu0 %2205, %v64
  %v2207 = vpop.permute.xlu0 %2206
  %v2209 = vmul.f32 %v2129, %v2147
  %v2210 = vmul.f32 %v2130, %v2151
  %v2211 = vmul.f32 %v2131, %v2155
  %v2212 = vmul.f32 %v2132, %v2159
  %v2213 = vmul.f32 %v2133, %v2163
  %v2214 = vmul.f32 %v2134, %v2167
  %v2215 = vmul.f32 %v2135, %v2171
  %v2216 = vmul.f32 %v2136, %v2175
  %v2217 = vmul.f32 %v2137, %v2179
  %v2218 = vmul.f32 %v2138, %v2183
  %v2219 = vmul.f32 %v2139, %v2187
  %v2220 = vmul.f32 %v2140, %v2191
  %v2221 = vmul.f32 %v2141, %v2195
  %v2222 = vmul.f32 %v2142, %v2199
  %v2223 = vmul.f32 %v2143, %v2203
  %v2224 = vmul.f32 %v2144, %v2207
  %2241 = vrot.lane.b32.xlu0 %v2209, 64
  %v2242 = vpop.permute.xlu0 %2241
  %2243 = vrot.lane.b32.xlu0 %v2210, 64
  %v2244 = vpop.permute.xlu0 %2243
  %2245 = vrot.lane.b32.xlu0 %v2211, 64
  %v2246 = vpop.permute.xlu0 %2245
  %2247 = vrot.lane.b32.xlu0 %v2212, 64
  %v2248 = vpop.permute.xlu0 %2247
  %2249 = vrot.lane.b32.xlu0 %v2213, 64
  %v2250 = vpop.permute.xlu0 %2249
  %2251 = vrot.lane.b32.xlu0 %v2214, 64
  %v2252 = vpop.permute.xlu0 %2251
  %2253 = vrot.lane.b32.xlu0 %v2215, 64
  %v2254 = vpop.permute.xlu0 %2253
  %2255 = vrot.lane.b32.xlu0 %v2216, 64
  %v2256 = vpop.permute.xlu0 %2255
  %2257 = vrot.lane.b32.xlu0 %v2217, 64
  %v2258 = vpop.permute.xlu0 %2257
  %2259 = vrot.lane.b32.xlu0 %v2218, 64
  %v2260 = vpop.permute.xlu0 %2259
  %2261 = vrot.lane.b32.xlu0 %v2219, 64
  %v2262 = vpop.permute.xlu0 %2261
  %2263 = vrot.lane.b32.xlu0 %v2220, 64
  %v2264 = vpop.permute.xlu0 %2263
  %2265 = vrot.lane.b32.xlu0 %v2221, 64
  %v2266 = vpop.permute.xlu0 %2265
  %2267 = vrot.lane.b32.xlu0 %v2222, 64
  %v2268 = vpop.permute.xlu0 %2267
  %2269 = vrot.lane.b32.xlu0 %v2223, 64
  %v2270 = vpop.permute.xlu0 %2269
  %2271 = vrot.lane.b32.xlu0 %v2224, 64
  %v2272 = vpop.permute.xlu0 %2271
  %v2289 = vadd.f32 %v2113, %v2242
  %v2290 = vadd.f32 %v2114, %v2244
  %v2291 = vadd.f32 %v2115, %v2246
  %v2292 = vadd.f32 %v2116, %v2248
  %v2293 = vadd.f32 %v2117, %v2250
  %v2294 = vadd.f32 %v2118, %v2252
  %v2295 = vadd.f32 %v2119, %v2254
  %v2296 = vadd.f32 %v2120, %v2256
  %v2297 = vadd.f32 %v2121, %v2258
  %v2298 = vadd.f32 %v2122, %v2260
  %v2299 = vadd.f32 %v2123, %v2262
  %v2300 = vadd.f32 %v2124, %v2264
  %v2301 = vadd.f32 %v2125, %v2266
  %v2302 = vadd.f32 %v2126, %v2268
  %v2303 = vadd.f32 %v2127, %v2270
  %v2304 = vadd.f32 %v2128, %v2272
  %2321 = vrot.lane.b32.xlu0 %v1215, 32
  %v2322 = vpop.permute.xlu0 %2321
  %2323 = vrot.lane.b32.xlu0 %v1216, 32
  %v2324 = vpop.permute.xlu0 %2323
  %2325 = vrot.lane.b32.xlu0 %v1217, 32
  %v2326 = vpop.permute.xlu0 %2325
  %2327 = vrot.lane.b32.xlu0 %v1218, 32
  %v2328 = vpop.permute.xlu0 %2327
  %2329 = vrot.lane.b32.xlu0 %v1219, 32
  %v2330 = vpop.permute.xlu0 %2329
  %2331 = vrot.lane.b32.xlu0 %v1220, 32
  %v2332 = vpop.permute.xlu0 %2331
  %2333 = vrot.lane.b32.xlu0 %v1221, 32
  %v2334 = vpop.permute.xlu0 %2333
  %2335 = vrot.lane.b32.xlu0 %v1222, 32
  %v2336 = vpop.permute.xlu0 %2335
  %2337 = vrot.lane.b32.xlu0 %v1223, 32
  %v2338 = vpop.permute.xlu0 %2337
  %2339 = vrot.lane.b32.xlu0 %v1224, 32
  %v2340 = vpop.permute.xlu0 %2339
  %2341 = vrot.lane.b32.xlu0 %v1225, 32
  %v2342 = vpop.permute.xlu0 %2341
  %2343 = vrot.lane.b32.xlu0 %v1226, 32
  %v2344 = vpop.permute.xlu0 %2343
  %2345 = vrot.lane.b32.xlu0 %v1227, 32
  %v2346 = vpop.permute.xlu0 %2345
  %2347 = vrot.lane.b32.xlu0 %v1228, 32
  %v2348 = vpop.permute.xlu0 %2347
  %2349 = vrot.lane.b32.xlu0 %v1229, 32
  %v2350 = vpop.permute.xlu0 %2349
  %2351 = vrot.lane.b32.xlu0 %v1230, 32
  %v2352 = vpop.permute.xlu0 %2351
  %2385 = vrot.lane.b32.xlu0 %v1760, 64
  %v2386 = vpop.permute.xlu0 %2385
  %2387 = vrot.lane.b32.xlu0 %v1761, 64
  %v2388 = vpop.permute.xlu0 %2387
  %2389 = vrot.lane.b32.xlu0 %v1762, 64
  %v2390 = vpop.permute.xlu0 %2389
  %2391 = vrot.lane.b32.xlu0 %v1763, 64
  %v2392 = vpop.permute.xlu0 %2391
  %2393 = vrot.lane.b32.xlu0 %v1764, 64
  %v2394 = vpop.permute.xlu0 %2393
  %2395 = vrot.lane.b32.xlu0 %v1765, 64
  %v2396 = vpop.permute.xlu0 %2395
  %2397 = vrot.lane.b32.xlu0 %v1766, 64
  %v2398 = vpop.permute.xlu0 %2397
  %2399 = vrot.lane.b32.xlu0 %v1767, 64
  %v2400 = vpop.permute.xlu0 %2399
  %2401 = vrot.lane.b32.xlu0 %v1768, 64
  %v2402 = vpop.permute.xlu0 %2401
  %2403 = vrot.lane.b32.xlu0 %v1769, 64
  %v2404 = vpop.permute.xlu0 %2403
  %2405 = vrot.lane.b32.xlu0 %v1770, 64
  %v2406 = vpop.permute.xlu0 %2405
  %2407 = vrot.lane.b32.xlu0 %v1771, 64
  %v2408 = vpop.permute.xlu0 %2407
  %2409 = vrot.lane.b32.xlu0 %v1772, 64
  %v2410 = vpop.permute.xlu0 %2409
  %2411 = vrot.lane.b32.xlu0 %v1773, 64
  %v2412 = vpop.permute.xlu0 %2411
  %2413 = vrot.lane.b32.xlu0 %v1774, 64
  %v2414 = vpop.permute.xlu0 %2413
  %2415 = vrot.lane.b32.xlu0 %v1775, 64
  %v2416 = vpop.permute.xlu0 %2415
  %2449 = vrot.lane.b32.xlu0 %v2289, 96
  %v2450 = vpop.permute.xlu0 %2449
  %2451 = vrot.lane.b32.xlu0 %v2290, 96
  %v2452 = vpop.permute.xlu0 %2451
  %2453 = vrot.lane.b32.xlu0 %v2291, 96
  %v2454 = vpop.permute.xlu0 %2453
  %2455 = vrot.lane.b32.xlu0 %v2292, 96
  %v2456 = vpop.permute.xlu0 %2455
  %2457 = vrot.lane.b32.xlu0 %v2293, 96
  %v2458 = vpop.permute.xlu0 %2457
  %2459 = vrot.lane.b32.xlu0 %v2294, 96
  %v2460 = vpop.permute.xlu0 %2459
  %2461 = vrot.lane.b32.xlu0 %v2295, 96
  %v2462 = vpop.permute.xlu0 %2461
  %2463 = vrot.lane.b32.xlu0 %v2296, 96
  %v2464 = vpop.permute.xlu0 %2463
  %2465 = vrot.lane.b32.xlu0 %v2297, 96
  %v2466 = vpop.permute.xlu0 %2465
  %2467 = vrot.lane.b32.xlu0 %v2298, 96
  %v2468 = vpop.permute.xlu0 %2467
  %2469 = vrot.lane.b32.xlu0 %v2299, 96
  %v2470 = vpop.permute.xlu0 %2469
  %2471 = vrot.lane.b32.xlu0 %v2300, 96
  %v2472 = vpop.permute.xlu0 %2471
  %2473 = vrot.lane.b32.xlu0 %v2301, 96
  %v2474 = vpop.permute.xlu0 %2473
  %2475 = vrot.lane.b32.xlu0 %v2302, 96
  %v2476 = vpop.permute.xlu0 %2475
  %2477 = vrot.lane.b32.xlu0 %v2303, 96
  %v2478 = vpop.permute.xlu0 %2477
  %2479 = vrot.lane.b32.xlu0 %v2304, 96
  %v2480 = vpop.permute.xlu0 %2479
  %vm2497 = vcmask 261120
  %v2498 = vsel %vm2497, %v686, %v2322
  %v2499 = vsel %vm2497, %v687, %v2324
  %v2500 = vsel %vm2497, %v688, %v2326
  %v2501 = vsel %vm2497, %v689, %v2328
  %v2502 = vsel %vm2497, %v690, %v2330
  %v2503 = vsel %vm2497, %v691, %v2332
  %v2504 = vsel %vm2497, %v692, %v2334
  %v2505 = vsel %vm2497, %v693, %v2336
  %v2506 = vsel %vm2497, %v694, %v2338
  %v2507 = vsel %vm2497, %v695, %v2340
  %v2508 = vsel %vm2497, %v696, %v2342
  %v2509 = vsel %vm2497, %v697, %v2344
  %v2510 = vsel %vm2497, %v698, %v2346
  %v2511 = vsel %vm2497, %v699, %v2348
  %v2512 = vsel %vm2497, %v700, %v2350
  %v2513 = vsel %vm2497, %v701, %v2352
  %vm2514 = vcmask 523264
  %v2515 = vsel %vm2514, %v2498, %v2386
  %v2516 = vsel %vm2514, %v2499, %v2388
  %v2517 = vsel %vm2514, %v2500, %v2390
  %v2518 = vsel %vm2514, %v2501, %v2392
  %v2519 = vsel %vm2514, %v2502, %v2394
  %v2520 = vsel %vm2514, %v2503, %v2396
  %v2521 = vsel %vm2514, %v2504, %v2398
  %v2522 = vsel %vm2514, %v2505, %v2400
  %v2523 = vsel %vm2514, %v2506, %v2402
  %v2524 = vsel %vm2514, %v2507, %v2404
  %v2525 = vsel %vm2514, %v2508, %v2406
  %v2526 = vsel %vm2514, %v2509, %v2408
  %v2527 = vsel %vm2514, %v2510, %v2410
  %v2528 = vsel %vm2514, %v2511, %v2412
  %v2529 = vsel %vm2514, %v2512, %v2414
  %v2530 = vsel %vm2514, %v2513, %v2416
  %vm2531 = vcmask 785408
  %v2532 = vsel %vm2531, %v2515, %v2450
  %v2533 = vsel %vm2531, %v2516, %v2452
  %v2534 = vsel %vm2531, %v2517, %v2454
  %v2535 = vsel %vm2531, %v2518, %v2456
  %v2536 = vsel %vm2531, %v2519, %v2458
  %v2537 = vsel %vm2531, %v2520, %v2460
  %v2538 = vsel %vm2531, %v2521, %v2462
  %v2539 = vsel %vm2531, %v2522, %v2464
  %v2540 = vsel %vm2531, %v2523, %v2466
  %v2541 = vsel %vm2531, %v2524, %v2468
  %v2542 = vsel %vm2531, %v2525, %v2470
  %v2543 = vsel %vm2531, %v2526, %v2472
  %v2544 = vsel %vm2531, %v2527, %v2474
  %v2545 = vsel %vm2531, %v2528, %v2476
  %v2546 = vsel %vm2531, %v2529, %v2478
  %v2547 = vsel %vm2531, %v2530, %v2480
  %2548 = vst [vmem:[%s4] sm:$0xff] %v2532
  %2549 = vst [vmem:[%s4 + $0x8] sm:$0xff] %v2533
  %2550 = vst [vmem:[%s4 + $0x10] sm:$0xff] %v2534
  %2551 = vst [vmem:[%s4 + $0x18] sm:$0xff] %v2535
  %2552 = vst [vmem:[%s4 + $0x20] sm:$0xff] %v2536
  %2553 = vst [vmem:[%s4 + $0x28] sm:$0xff] %v2537
  %2554 = vst [vmem:[%s4 + $0x30] sm:$0xff] %v2538
  %2555 = vst [vmem:[%s4 + $0x38] sm:$0xff] %v2539
  %2556 = vst [vmem:[%s4 + $0x40] sm:$0xff] %v2540
  %2557 = vst [vmem:[%s4 + $0x48] sm:$0xff] %v2541
  %2558 = vst [vmem:[%s4 + $0x50] sm:$0xff] %v2542
  %2559 = vst [vmem:[%s4 + $0x58] sm:$0xff] %v2543
  %2560 = vst [vmem:[%s4 + $0x60] sm:$0xff] %v2544
  %2561 = vst [vmem:[%s4 + $0x68] sm:$0xff] %v2545
  %2562 = vst [vmem:[%s4 + $0x70] sm:$0xff] %v2546
  %2563 = vst [vmem:[%s4 + $0x78] sm:$0xff] %v2547
  // Predicated region
  $region18: #{group_embedding_forward.1} parent=0 // pred_check
    _
  $region19: #{group_embedding_forward.1} parent=0 // pred_check_branch
    %2565 = sbr.rel (0) target = $region21
  $region20: #{group_embedding_forward.1} parent=0 // pred_region
    _
  $region21: #{group_embedding_forward.1} parent=0 // pred_fallthru
    _
  // Predicated region
  $region22: #{group_embedding_forward.1} parent=0 // pred_check
    _
  $region23: #{group_embedding_forward.1} parent=0 // pred_check_branch
    %2567 = sbr.rel (0) target = $region25
  $region24: #{group_embedding_forward.1} parent=0 // pred_region
    _
  $region25: #{group_embedding_forward.1} parent=0 // pred_fallthru
    _

</llo_original>
